<compile_context>
chip_gen: v5e
topology: v5e:2x2
jax: 0.10.0
libtpu: 0.0.40
codegen_flags: <defaults>
</compile_context>

<pallas_src>
import functools
import numpy as np
import jax
import jax.numpy as jnp
from jax import lax
from jax.experimental import pallas as pl
from jax.experimental.pallas import tpu as pltpu


def _attention_kernel(x_ref, wqkv_ref, mix_ref, gamma_ref, beta_ref,
                      wp_ref, bp_ref, o_ref, *, N, H, HD, HDV, HF, CPS):
    CH = x_ref.shape[-1]            # lane chunk (128); batch lives on lanes
    QR = H * HD * N                 # q rows (= k rows) in the fused projection

    # Head-mixing scalars from SMEM, hoisted out of the chunk loop.
    wl = [[mix_ref[h, g] for g in range(H)] for h in range(H)]
    bl = [mix_ref[H, g] for g in range(H)]
    ww = [[mix_ref[H + 1 + h, g] for g in range(H)] for h in range(H)]
    bw = [mix_ref[2 * H + 1, g] for g in range(H)]

    gamma = gamma_ref[...].reshape(HF, N, 1)
    beta = beta_ref[...].reshape(HF, N, 1)
    bp = bp_ref[...]

    def chunk(i, carry):
        xc = x_ref[i]                               # (ND+8, CH); ones row feeds the bias

        # Fused q|k|v projection (+bias via the folded ones row) in one MXU matmul.
        qkv = jnp.dot(wqkv_ref[...], xc, preferred_element_type=jnp.float32)
        q = qkv[0:QR].reshape(H, HD, N, CH)         # (H, HD, Nq, CH), scale folded in
        k = qkv[QR:2 * QR].reshape(H, HD, N, CH)    # (H, HD, Nk, CH)
        v = qkv[2 * QR:].reshape(H, HDV, N, CH)     # (H, HDV, Nk, CH)

        # Attention logits per head, layout (key m, query n, CH).  Key axis
        # leading => softmax / attn@v are leading-dim (VPU) reductions.
        logits = []
        for h in range(H):
            a = k[h, 0][:, None, :] * q[h, 0][None, :, :]
            for hd in range(1, HD):
                a = a + k[h, hd][:, None, :] * q[h, hd][None, :, :]
            logits.append(a)                        # (M, N, CH)

        # proj_l: head mixing (unrolled FMA, scalar weights from SMEM).
        mixed = []
        for g in range(H):
            acc = logits[0] * wl[0][g]
            for h in range(1, H):
                acc = acc + logits[h] * wl[h][g]
            mixed.append(acc + bl[g])

        # Softmax over the key axis, approximate reciprocal on the EUP.
        probs = []
        for g in range(H):
            a = mixed[g]
            a = a - jnp.max(a, axis=0, keepdims=True)
            e = jnp.exp(a)
            s = jnp.sum(e, axis=0, keepdims=True)
            probs.append(e * pl.reciprocal(s, approx=True))

        # proj_w: second head mixing.  (attn_drop: identity in eval mode.)
        attn = []
        for g in range(H):
            acc = probs[0] * ww[0][g]
            for h in range(1, H):
                acc = acc + probs[h] * ww[h][g]
            attn.append(acc + bw[g])                # (M, N, CH)

        # Weighted sum of values: out[h,hdv,n,t] = sum_m attn[h][m,n,t]*v[h,hdv,m,t]
        outs = []
        for h in range(H):
            acc = attn[h][0][None, :, :] * v[h, :, 0:1, :]
            for m in range(1, N):
                acc = acc + attn[h][m][None, :, :] * v[h, :, m:m + 1, :]
            outs.append(acc)                        # (HDV, N, CH)
        y = jnp.concatenate(outs, axis=0)           # (HF, N, CH)

        # LayerNorm over the feature axis (leading axis), eps = 1e-5.
        mu = jnp.mean(y, axis=0, keepdims=True)
        var = jnp.mean((y - mu) ** 2, axis=0, keepdims=True)
        yn = (y - mu) * lax.rsqrt(var + 1e-5)
        yn = yn * gamma + beta

        # Swish, then output projection (block-diagonal MXU matmul) + bias.
        z = (yn * jax.nn.sigmoid(yn)).reshape(HF * N, CH)      # rows = (f, n)
        o = jnp.dot(wp_ref[...], z, preferred_element_type=jnp.float32) + bp
        # (proj_drop: identity in eval mode)
        o_ref[i] = o                                # (N*O, CH) lane-dense store
        return carry

    lax.fori_loop(0, CPS, chunk, 0, unroll=True)


def make_attention(dim, num_heads, hidden_features, out_features, batch_tile=2048):
    N = 8                                   # token_num
    D = dim // N                            # per-token input dim
    HF = hidden_features // N               # per-token hidden dim
    O = out_features // N                   # per-token output dim
    H = num_heads
    HD = D // H                             # q/k head dim
    HDV = HF // H                           # v head dim
    scale = HD ** (-0.5)
    ND, NO, HFN = N * D, N * O, HF * N
    NDB = ND + 8                            # +8 sublane-aligned bias block (ones row)
    QR = H * HD * N
    QKVR = 2 * QR + H * HDV * N
    CH = 128                                # lane chunk per inner fori_loop iteration

    def pack_params(p):
        eye = jnp.eye(N, dtype=jnp.float32)
        # Fused q|k|v weight, block-diagonal over tokens.
        #   rows: q ((h,hd), n) | k ((h,hd), m) | v ((h,hdv), m)
        #   cols: (token n', input feature e) + bias column;  scale folded into q.
        aq = (scale * p["wq"].T)[:, None, None, :] * eye[None, :, :, None]
        ak = p["wk"].T[:, None, None, :] * eye[None, :, :, None]
        av = p["wv"].T[:, None, None, :] * eye[None, :, :, None]
        wqkv = jnp.concatenate([aq.reshape(QR, ND), ak.reshape(QR, ND),
                                av.reshape(H * HDV * N, ND)], axis=0)
        bqkv = jnp.concatenate([jnp.repeat(scale * p["bq"], N),
                                jnp.repeat(p["bk"], N),
                                jnp.repeat(p["bv"], N)]).reshape(QKVR, 1)
        # Fold the bias into the matmul: column ND multiplies x's ones row.
        wqkv = jnp.concatenate(
            [wqkv, bqkv, jnp.zeros((QKVR, NDB - ND - 1), jnp.float32)], axis=1)
        # Output projection, block-diagonal over tokens: rows (n, j), cols (f, n').
        ap = p["wp"].T[None, :, :, None] * eye[:, None, None, :]
        wpb = ap.reshape(NO, HFN)
        bpb = jnp.tile(p["bp"], N).reshape(NO, 1)
        gam = jnp.repeat(p["gamma"], N).reshape(HFN, 1)
        bet = jnp.repeat(p["beta"], N).reshape(HFN, 1)
        # Head-mixing scalar table for SMEM: rows [wl (H) | bl | ww (H) | bw].
        mix = jnp.concatenate([p["wl"], p["bl"].reshape(1, H),
                               p["ww"], p["bw"].reshape(1, H)], axis=0)
        to32 = lambda a: a.astype(jnp.float32)
        return tuple(map(to32, (wqkv, mix, gam, bet, wpb, bpb)))

    def forward(x, p):
        B = x.shape[0]
        n_chunks = -(-B // CH)                                  # ceil(B / 128)
        cps = max(1, min(batch_tile // CH, n_chunks))           # chunks per grid step
        # Guarantee >= 2 grid steps when the batch allows it, so the "parallel"
        # batch axis can be sharded across the two TensorCores on v7x.
        if n_chunks >= 2 and -(-n_chunks // cps) < 2:
            cps = -(-n_chunks // 2)
        grid = -(-n_chunks // cps)
        tc = grid * cps
        Bp = tc * CH

        wqkv, mix, gam, bet, wpb, bpb = pack_params(p)

        # Batch on the 128-lane axis, chunk index on the leading axis; the
        # trailing ones row feeds the folded qkv bias column.
        xp = jnp.pad(x.astype(jnp.float32), ((0, Bp - B), (0, 0)))      # (Bp, ND)
        x3 = xp.reshape(tc, CH, ND).transpose(0, 2, 1)                  # (tc, ND, CH)
        x3 = jnp.concatenate(
            [x3, jnp.ones((tc, 1, CH), jnp.float32),
             jnp.zeros((tc, NDB - ND - 1, CH), jnp.float32)], axis=1)   # (tc, NDB, CH)

        kernel = functools.partial(_attention_kernel, N=N, H=H, HD=HD,
                                   HDV=HDV, HF=HF, CPS=cps)
        out = pl.pallas_call(
            kernel,
            out_shape=jax.ShapeDtypeStruct((tc, NO, CH), jnp.float32),
            grid=(grid,),
            in_specs=[
                pl.BlockSpec((cps, NDB, CH), lambda b: (b, 0, 0)),      # x slab
                pl.BlockSpec((QKVR, NDB), lambda b: (0, 0)),            # fused qkv W|b
                pl.BlockSpec(memory_space=pltpu.MemorySpace.SMEM),      # head-mix scalars
                pl.BlockSpec((HFN, 1), lambda b: (0, 0)),               # LN gamma
                pl.BlockSpec((HFN, 1), lambda b: (0, 0)),               # LN beta
                pl.BlockSpec((NO, HFN), lambda b: (0, 0)),              # out-proj W
                pl.BlockSpec((NO, 1), lambda b: (0, 0)),                # out-proj b
            ],
            out_specs=pl.BlockSpec((cps, NO, CH), lambda b: (b, 0, 0)),
            compiler_params=pltpu.CompilerParams(
                dimension_semantics=("parallel",),
                vmem_limit_bytes=32 * 1024 * 1024),
        )(x3, wqkv, mix, gam, bet, wpb, bpb)
        return out.transpose(0, 2, 1).reshape(Bp, NO)[:B]               # (B, out_features)

    return forward, dict(N=N, D=D, HF=HF, O=O, H=H, HD=HD, HDV=HDV, scale=scale)


def reference_forward(x, p, cfg):
    """Pure-JAX replica of the PyTorch forward (eval mode), for verification."""
    N, D, HF, O, H, HD, HDV, scale = (cfg["N"], cfg["D"], cfg["HF"], cfg["O"],
                                      cfg["H"], cfg["HD"], cfg["HDV"], cfg["scale"])
    B = x.shape[0]
    xr = x.reshape(B, N, D)
    q = (xr @ p["wq"] + p["bq"]).reshape(B, N, H, HD).transpose(0, 2, 1, 3) * scale
    k = (xr @ p["wk"] + p["bk"]).reshape(B, N, H, HD).transpose(0, 2, 1, 3)
    attn = q @ k.transpose(0, 1, 3, 2)                              # (B,H,N,N)
    attn = jnp.einsum("bhnm,hg->bgnm", attn, p["wl"]) + p["bl"][None, :, None, None]
    attn = jax.nn.softmax(attn, axis=-1)
    attn = jnp.einsum("bhnm,hg->bgnm", attn, p["ww"]) + p["bw"][None, :, None, None]
    v = (xr @ p["wv"] + p["bv"]).reshape(B, N, H, HDV).transpose(0, 2, 1, 3)
    o = (attn @ v).transpose(0, 2, 1, 3).reshape(B, N, HF)
    mu = o.mean(-1, keepdims=True)
    var = ((o - mu) ** 2).mean(-1, keepdims=True)
    o = (o - mu) / jnp.sqrt(var + 1e-5) * p["gamma"] + p["beta"]
    o = o * jax.nn.sigmoid(o)
    o = o @ p["wp"] + p["bp"]
    return o.reshape(B, -1)


if __name__ == "__main__":
    # Module hyper-params (small, consistent with the asserts in __init__).
    dim, num_heads, hidden_features, out_features = 64, 2, 128, 64
    B = 4

    fwd, cfg = make_attention(dim, num_heads, hidden_features, out_features)
    N, D, HF, O, H = cfg["N"], cfg["D"], cfg["HF"], cfg["O"], cfg["H"]

    # Deterministic parameter init (weights stored as (in, out); y = x @ W + b).
    key = jax.random.PRNGKey(0)
    ks = jax.random.split(key, 12)
    p = {
        "wq": jax.random.normal(ks[0], (D, D), jnp.float32) * 0.2,
        "bq": jax.random.normal(ks[1], (D,), jnp.float32) * 0.05,
        "wk": jax.random.normal(ks[2], (D, D), jnp.float32) * 0.2,
        "bk": jax.random.normal(ks[3], (D,), jnp.float32) * 0.05,
        "wv": jax.random.normal(ks[4], (D, HF), jnp.float32) * 0.2,
        "bv": jax.random.normal(ks[5], (HF,), jnp.float32) * 0.05,
        "wl": jax.random.normal(ks[6], (H, H), jnp.float32) * 0.3,
        "bl": jax.random.normal(ks[7], (H,), jnp.float32) * 0.05,
        "ww": jax.random.normal(ks[8], (H, H), jnp.float32) * 0.3,
        "bw": jax.random.normal(ks[9], (H,), jnp.float32) * 0.05,
        "gamma": jnp.ones((HF,), jnp.float32),
        "beta": jnp.zeros((HF,), jnp.float32),
        "wp": jax.random.normal(ks[10], (HF, O), jnp.float32) * 0.2,
        "bp": jax.random.normal(ks[11], (O,), jnp.float32) * 0.05,
    }

    x = jax.random.normal(jax.random.PRNGKey(42), (B, dim), jnp.float32)

    out = jax.block_until_ready(jax.jit(fwd)(x, p))
    ref = jax.block_until_ready(reference_forward(x, p, cfg))

    assert out.shape == (B, out_features), out.shape
    # Tolerance covers the EUP approximate reciprocal in the softmax denominator.
    np.testing.assert_allclose(np.asarray(out), np.asarray(ref), rtol=2e-3, atol=2e-3)

    print("KERNEL_OK")
</pallas_src>

<mosaic_0001>
module attributes {stable_mosaic.version = 11 : i64} {
  func.func @_attention_kernel(%arg0: i32, %arg1: memref<1x72x128xf32, #tpu.memory_space<vmem>>, %arg2: memref<256x72xf32, #tpu.memory_space<vmem>>, %arg3: memref<6x2xf32, #tpu.memory_space<smem>>, %arg4: memref<128x1xf32, #tpu.memory_space<vmem>>, %arg5: memref<128x1xf32, #tpu.memory_space<vmem>>, %arg6: memref<64x128xf32, #tpu.memory_space<vmem>>, %arg7: memref<64x1xf32, #tpu.memory_space<vmem>>, %arg8: memref<1x64x128xf32, #tpu.memory_space<vmem>>) attributes {dimension_semantics = [#tpu.dimension_semantics<parallel>], iteration_bounds = array<i64: 1>, scalar_prefetch = 0 : i64, scratch_operands = 0 : i64, tpu.core_type = #tpu.core_type<tc>, window_params = [{transform_indices = @transform_0, window_bounds = array<i64: 1, 72, 128>}, {pipeline_mode = #tpu.pipeline_mode<synchronous>, transform_indices = @transform_1, window_bounds = array<i64: 256, 72>}, {transform_indices = @transform_2, window_bounds = array<i64: 6, 2>}, {pipeline_mode = #tpu.pipeline_mode<synchronous>, transform_indices = @transform_3, window_bounds = array<i64: 128, 1>}, {pipeline_mode = #tpu.pipeline_mode<synchronous>, transform_indices = @transform_4, window_bounds = array<i64: 128, 1>}, {pipeline_mode = #tpu.pipeline_mode<synchronous>, transform_indices = @transform_5, window_bounds = array<i64: 64, 128>}, {pipeline_mode = #tpu.pipeline_mode<synchronous>, transform_indices = @transform_6, window_bounds = array<i64: 64, 1>}, {transform_indices = @transform_7, window_bounds = array<i64: 1, 64, 128>}]} {
    %c0 = arith.constant 0 : index
    %c0_0 = arith.constant 0 : index
    %0 = memref.load %arg3[%c0, %c0_0] : memref<6x2xf32, #tpu.memory_space<smem>>
    %c0_1 = arith.constant 0 : index
    %c1 = arith.constant 1 : index
    %1 = memref.load %arg3[%c0_1, %c1] : memref<6x2xf32, #tpu.memory_space<smem>>
    %c1_2 = arith.constant 1 : index
    %c0_3 = arith.constant 0 : index
    %2 = memref.load %arg3[%c1_2, %c0_3] : memref<6x2xf32, #tpu.memory_space<smem>>
    %c1_4 = arith.constant 1 : index
    %c1_5 = arith.constant 1 : index
    %3 = memref.load %arg3[%c1_4, %c1_5] : memref<6x2xf32, #tpu.memory_space<smem>>
    %c2 = arith.constant 2 : index
    %c0_6 = arith.constant 0 : index
    %4 = memref.load %arg3[%c2, %c0_6] : memref<6x2xf32, #tpu.memory_space<smem>>
    %c2_7 = arith.constant 2 : index
    %c1_8 = arith.constant 1 : index
    %5 = memref.load %arg3[%c2_7, %c1_8] : memref<6x2xf32, #tpu.memory_space<smem>>
    %c3 = arith.constant 3 : index
    %c0_9 = arith.constant 0 : index
    %6 = memref.load %arg3[%c3, %c0_9] : memref<6x2xf32, #tpu.memory_space<smem>>
    %c3_10 = arith.constant 3 : index
    %c1_11 = arith.constant 1 : index
    %7 = memref.load %arg3[%c3_10, %c1_11] : memref<6x2xf32, #tpu.memory_space<smem>>
    %c4 = arith.constant 4 : index
    %c0_12 = arith.constant 0 : index
    %8 = memref.load %arg3[%c4, %c0_12] : memref<6x2xf32, #tpu.memory_space<smem>>
    %c4_13 = arith.constant 4 : index
    %c1_14 = arith.constant 1 : index
    %9 = memref.load %arg3[%c4_13, %c1_14] : memref<6x2xf32, #tpu.memory_space<smem>>
    %c5 = arith.constant 5 : index
    %c0_15 = arith.constant 0 : index
    %10 = memref.load %arg3[%c5, %c0_15] : memref<6x2xf32, #tpu.memory_space<smem>>
    %c5_16 = arith.constant 5 : index
    %c1_17 = arith.constant 1 : index
    %11 = memref.load %arg3[%c5_16, %c1_17] : memref<6x2xf32, #tpu.memory_space<smem>>
    %c0_18 = arith.constant 0 : index
    %c0_19 = arith.constant 0 : index
    %12 = vector.load %arg4[%c0_18, %c0_19] : memref<128x1xf32, #tpu.memory_space<vmem>>, vector<128x1xf32>
    %13 = vector.shape_cast %12 : vector<128x1xf32> to vector<16x8x1xf32>
    %c0_20 = arith.constant 0 : index
    %c0_21 = arith.constant 0 : index
    %14 = vector.load %arg5[%c0_20, %c0_21] : memref<128x1xf32, #tpu.memory_space<vmem>>, vector<128x1xf32>
    %15 = vector.shape_cast %14 : vector<128x1xf32> to vector<16x8x1xf32>
    %c0_22 = arith.constant 0 : index
    %c0_23 = arith.constant 0 : index
    %16 = vector.load %arg7[%c0_22, %c0_23] : memref<64x1xf32, #tpu.memory_space<vmem>>, vector<64x1xf32>
    %c0_i32 = arith.constant 0 : i32
    %17 = arith.index_cast %c0_i32 : i32 to index
    %c0_24 = arith.constant 0 : index
    %c0_25 = arith.constant 0 : index
    %18 = vector.load %arg1[%17, %c0_24, %c0_25] : memref<1x72x128xf32, #tpu.memory_space<vmem>>, vector<1x72x128xf32>
    %19 = vector.shape_cast %18 : vector<1x72x128xf32> to vector<72x128xf32>
    %c0_26 = arith.constant 0 : index
    %c0_27 = arith.constant 0 : index
    %20 = vector.load %arg2[%c0_26, %c0_27] : memref<256x72xf32, #tpu.memory_space<vmem>>, vector<256x72xf32>
    %cst = arith.constant dense<0.000000e+00> : vector<256x128xf32>
    %21 = tpu.matmul %20, %19, %cst {dimension_numbers = #tpu.dot_dimension_numbers<[1], [0], [0], [1], [0, 0, 1, 1], [], []>} : vector<256x72xf32>, vector<72x128xf32>, vector<256x128xf32> -> vector<256x128xf32>
    %22 = vector.extract_strided_slice %21 {offsets = [0, 0], sizes = [64, 128], strides = [1, 1]} : vector<256x128xf32> to vector<64x128xf32>
    %23 = vector.shape_cast %22 : vector<64x128xf32> to vector<2x4x8x128xf32>
    %24 = vector.extract_strided_slice %21 {offsets = [64, 0], sizes = [64, 128], strides = [1, 1]} : vector<256x128xf32> to vector<64x128xf32>
    %25 = vector.shape_cast %24 : vector<64x128xf32> to vector<2x4x8x128xf32>
    %26 = vector.extract_strided_slice %21 {offsets = [128, 0], sizes = [128, 128], strides = [1, 1]} : vector<256x128xf32> to vector<128x128xf32>
    %27 = vector.shape_cast %26 : vector<128x128xf32> to vector<2x8x8x128xf32>
    %28 = vector.extract_strided_slice %25 {offsets = [0, 0, 0, 0], sizes = [1, 1, 8, 128], strides = [1, 1, 1, 1]} : vector<2x4x8x128xf32> to vector<1x1x8x128xf32>
    %29 = vector.shape_cast %28 : vector<1x1x8x128xf32> to vector<8x128xf32>
    %30 = vector.shape_cast %29 : vector<8x128xf32> to vector<8x1x128xf32>
    %31 = vector.extract_strided_slice %23 {offsets = [0, 0, 0, 0], sizes = [1, 1, 8, 128], strides = [1, 1, 1, 1]} : vector<2x4x8x128xf32> to vector<1x1x8x128xf32>
    %32 = vector.shape_cast %31 : vector<1x1x8x128xf32> to vector<8x128xf32>
    %33 = vector.shape_cast %32 : vector<8x128xf32> to vector<1x8x128xf32>
    %34 = vector.broadcast %30 : vector<8x1x128xf32> to vector<8x8x128xf32>
    %35 = vector.broadcast %33 : vector<1x8x128xf32> to vector<8x8x128xf32>
    %36 = arith.mulf %34, %35 : vector<8x8x128xf32>
    %37 = vector.extract_strided_slice %25 {offsets = [0, 1, 0, 0], sizes = [1, 1, 8, 128], strides = [1, 1, 1, 1]} : vector<2x4x8x128xf32> to vector<1x1x8x128xf32>
    %38 = vector.shape_cast %37 : vector<1x1x8x128xf32> to vector<8x128xf32>
    %39 = vector.shape_cast %38 : vector<8x128xf32> to vector<8x1x128xf32>
    %40 = vector.extract_strided_slice %23 {offsets = [0, 1, 0, 0], sizes = [1, 1, 8, 128], strides = [1, 1, 1, 1]} : vector<2x4x8x128xf32> to vector<1x1x8x128xf32>
    %41 = vector.shape_cast %40 : vector<1x1x8x128xf32> to vector<8x128xf32>
    %42 = vector.shape_cast %41 : vector<8x128xf32> to vector<1x8x128xf32>
    %43 = vector.broadcast %39 : vector<8x1x128xf32> to vector<8x8x128xf32>
    %44 = vector.broadcast %42 : vector<1x8x128xf32> to vector<8x8x128xf32>
    %45 = arith.mulf %43, %44 : vector<8x8x128xf32>
    %46 = arith.addf %36, %45 : vector<8x8x128xf32>
    %47 = vector.extract_strided_slice %25 {offsets = [0, 2, 0, 0], sizes = [1, 1, 8, 128], strides = [1, 1, 1, 1]} : vector<2x4x8x128xf32> to vector<1x1x8x128xf32>
    %48 = vector.shape_cast %47 : vector<1x1x8x128xf32> to vector<8x128xf32>
    %49 = vector.shape_cast %48 : vector<8x128xf32> to vector<8x1x128xf32>
    %50 = vector.extract_strided_slice %23 {offsets = [0, 2, 0, 0], sizes = [1, 1, 8, 128], strides = [1, 1, 1, 1]} : vector<2x4x8x128xf32> to vector<1x1x8x128xf32>
    %51 = vector.shape_cast %50 : vector<1x1x8x128xf32> to vector<8x128xf32>
    %52 = vector.shape_cast %51 : vector<8x128xf32> to vector<1x8x128xf32>
    %53 = vector.broadcast %49 : vector<8x1x128xf32> to vector<8x8x128xf32>
    %54 = vector.broadcast %52 : vector<1x8x128xf32> to vector<8x8x128xf32>
    %55 = arith.mulf %53, %54 : vector<8x8x128xf32>
    %56 = arith.addf %46, %55 : vector<8x8x128xf32>
    %57 = vector.extract_strided_slice %25 {offsets = [0, 3, 0, 0], sizes = [1, 1, 8, 128], strides = [1, 1, 1, 1]} : vector<2x4x8x128xf32> to vector<1x1x8x128xf32>
    %58 = vector.shape_cast %57 : vector<1x1x8x128xf32> to vector<8x128xf32>
    %59 = vector.shape_cast %58 : vector<8x128xf32> to vector<8x1x128xf32>
    %60 = vector.extract_strided_slice %23 {offsets = [0, 3, 0, 0], sizes = [1, 1, 8, 128], strides = [1, 1, 1, 1]} : vector<2x4x8x128xf32> to vector<1x1x8x128xf32>
    %61 = vector.shape_cast %60 : vector<1x1x8x128xf32> to vector<8x128xf32>
    %62 = vector.shape_cast %61 : vector<8x128xf32> to vector<1x8x128xf32>
    %63 = vector.broadcast %59 : vector<8x1x128xf32> to vector<8x8x128xf32>
    %64 = vector.broadcast %62 : vector<1x8x128xf32> to vector<8x8x128xf32>
    %65 = arith.mulf %63, %64 : vector<8x8x128xf32>
    %66 = arith.addf %56, %65 : vector<8x8x128xf32>
    %67 = vector.extract_strided_slice %25 {offsets = [1, 0, 0, 0], sizes = [1, 1, 8, 128], strides = [1, 1, 1, 1]} : vector<2x4x8x128xf32> to vector<1x1x8x128xf32>
    %68 = vector.shape_cast %67 : vector<1x1x8x128xf32> to vector<8x128xf32>
    %69 = vector.shape_cast %68 : vector<8x128xf32> to vector<8x1x128xf32>
    %70 = vector.extract_strided_slice %23 {offsets = [1, 0, 0, 0], sizes = [1, 1, 8, 128], strides = [1, 1, 1, 1]} : vector<2x4x8x128xf32> to vector<1x1x8x128xf32>
    %71 = vector.shape_cast %70 : vector<1x1x8x128xf32> to vector<8x128xf32>
    %72 = vector.shape_cast %71 : vector<8x128xf32> to vector<1x8x128xf32>
    %73 = vector.broadcast %69 : vector<8x1x128xf32> to vector<8x8x128xf32>
    %74 = vector.broadcast %72 : vector<1x8x128xf32> to vector<8x8x128xf32>
    %75 = arith.mulf %73, %74 : vector<8x8x128xf32>
    %76 = vector.extract_strided_slice %25 {offsets = [1, 1, 0, 0], sizes = [1, 1, 8, 128], strides = [1, 1, 1, 1]} : vector<2x4x8x128xf32> to vector<1x1x8x128xf32>
    %77 = vector.shape_cast %76 : vector<1x1x8x128xf32> to vector<8x128xf32>
    %78 = vector.shape_cast %77 : vector<8x128xf32> to vector<8x1x128xf32>
    %79 = vector.extract_strided_slice %23 {offsets = [1, 1, 0, 0], sizes = [1, 1, 8, 128], strides = [1, 1, 1, 1]} : vector<2x4x8x128xf32> to vector<1x1x8x128xf32>
    %80 = vector.shape_cast %79 : vector<1x1x8x128xf32> to vector<8x128xf32>
    %81 = vector.shape_cast %80 : vector<8x128xf32> to vector<1x8x128xf32>
    %82 = vector.broadcast %78 : vector<8x1x128xf32> to vector<8x8x128xf32>
    %83 = vector.broadcast %81 : vector<1x8x128xf32> to vector<8x8x128xf32>
    %84 = arith.mulf %82, %83 : vector<8x8x128xf32>
    %85 = arith.addf %75, %84 : vector<8x8x128xf32>
    %86 = vector.extract_strided_slice %25 {offsets = [1, 2, 0, 0], sizes = [1, 1, 8, 128], strides = [1, 1, 1, 1]} : vector<2x4x8x128xf32> to vector<1x1x8x128xf32>
    %87 = vector.shape_cast %86 : vector<1x1x8x128xf32> to vector<8x128xf32>
    %88 = vector.shape_cast %87 : vector<8x128xf32> to vector<8x1x128xf32>
    %89 = vector.extract_strided_slice %23 {offsets = [1, 2, 0, 0], sizes = [1, 1, 8, 128], strides = [1, 1, 1, 1]} : vector<2x4x8x128xf32> to vector<1x1x8x128xf32>
    %90 = vector.shape_cast %89 : vector<1x1x8x128xf32> to vector<8x128xf32>
    %91 = vector.shape_cast %90 : vector<8x128xf32> to vector<1x8x128xf32>
    %92 = vector.broadcast %88 : vector<8x1x128xf32> to vector<8x8x128xf32>
    %93 = vector.broadcast %91 : vector<1x8x128xf32> to vector<8x8x128xf32>
    %94 = arith.mulf %92, %93 : vector<8x8x128xf32>
    %95 = arith.addf %85, %94 : vector<8x8x128xf32>
    %96 = vector.extract_strided_slice %25 {offsets = [1, 3, 0, 0], sizes = [1, 1, 8, 128], strides = [1, 1, 1, 1]} : vector<2x4x8x128xf32> to vector<1x1x8x128xf32>
    %97 = vector.shape_cast %96 : vector<1x1x8x128xf32> to vector<8x128xf32>
    %98 = vector.shape_cast %97 : vector<8x128xf32> to vector<8x1x128xf32>
    %99 = vector.extract_strided_slice %23 {offsets = [1, 3, 0, 0], sizes = [1, 1, 8, 128], strides = [1, 1, 1, 1]} : vector<2x4x8x128xf32> to vector<1x1x8x128xf32>
    %100 = vector.shape_cast %99 : vector<1x1x8x128xf32> to vector<8x128xf32>
    %101 = vector.shape_cast %100 : vector<8x128xf32> to vector<1x8x128xf32>
    %102 = vector.broadcast %98 : vector<8x1x128xf32> to vector<8x8x128xf32>
    %103 = vector.broadcast %101 : vector<1x8x128xf32> to vector<8x8x128xf32>
    %104 = arith.mulf %102, %103 : vector<8x8x128xf32>
    %105 = arith.addf %95, %104 : vector<8x8x128xf32>
    %106 = vector.broadcast %0 : f32 to vector<8x8x128xf32>
    %107 = arith.mulf %66, %106 : vector<8x8x128xf32>
    %108 = vector.broadcast %2 : f32 to vector<8x8x128xf32>
    %109 = arith.mulf %105, %108 : vector<8x8x128xf32>
    %110 = arith.addf %107, %109 : vector<8x8x128xf32>
    %111 = vector.broadcast %4 : f32 to vector<8x8x128xf32>
    %112 = arith.addf %110, %111 : vector<8x8x128xf32>
    %113 = vector.broadcast %1 : f32 to vector<8x8x128xf32>
    %114 = arith.mulf %66, %113 : vector<8x8x128xf32>
    %115 = vector.broadcast %3 : f32 to vector<8x8x128xf32>
    %116 = arith.mulf %105, %115 : vector<8x8x128xf32>
    %117 = arith.addf %114, %116 : vector<8x8x128xf32>
    %118 = vector.broadcast %5 : f32 to vector<8x8x128xf32>
    %119 = arith.addf %117, %118 : vector<8x8x128xf32>
    %cst_28 = arith.constant dense<0xFF800000> : vector<8x128xf32>
    %120 = vector.multi_reduction <maximumf>, %112, %cst_28 [0] : vector<8x8x128xf32> to vector<8x128xf32>
    %121 = vector.shape_cast %120 : vector<8x128xf32> to vector<1x8x128xf32>
    %122 = vector.broadcast %121 : vector<1x8x128xf32> to vector<8x8x128xf32>
    %123 = arith.subf %112, %122 : vector<8x8x128xf32>
    %124 = math.exp %123 : vector<8x8x128xf32>
    %cst_29 = arith.constant dense<0.000000e+00> : vector<8x128xf32>
    %125 = vector.multi_reduction <add>, %124, %cst_29 [0] : vector<8x8x128xf32> to vector<8x128xf32>
    %126 = vector.shape_cast %125 : vector<8x128xf32> to vector<1x8x128xf32>
    %127 = tpu.reciprocal %126 {approx = true} : vector<1x8x128xf32> -> vector<1x8x128xf32>
    %128 = vector.broadcast %127 : vector<1x8x128xf32> to vector<8x8x128xf32>
    %129 = arith.mulf %124, %128 : vector<8x8x128xf32>
    %cst_30 = arith.constant dense<0xFF800000> : vector<8x128xf32>
    %130 = vector.multi_reduction <maximumf>, %119, %cst_30 [0] : vector<8x8x128xf32> to vector<8x128xf32>
    %131 = vector.shape_cast %130 : vector<8x128xf32> to vector<1x8x128xf32>
    %132 = vector.broadcast %131 : vector<1x8x128xf32> to vector<8x8x128xf32>
    %133 = arith.subf %119, %132 : vector<8x8x128xf32>
    %134 = math.exp %133 : vector<8x8x128xf32>
    %cst_31 = arith.constant dense<0.000000e+00> : vector<8x128xf32>
    %135 = vector.multi_reduction <add>, %134, %cst_31 [0] : vector<8x8x128xf32> to vector<8x128xf32>
    %136 = vector.shape_cast %135 : vector<8x128xf32> to vector<1x8x128xf32>
    %137 = tpu.reciprocal %136 {approx = true} : vector<1x8x128xf32> -> vector<1x8x128xf32>
    %138 = vector.broadcast %137 : vector<1x8x128xf32> to vector<8x8x128xf32>
    %139 = arith.mulf %134, %138 : vector<8x8x128xf32>
    %140 = vector.broadcast %6 : f32 to vector<8x8x128xf32>
    %141 = arith.mulf %129, %140 : vector<8x8x128xf32>
    %142 = vector.broadcast %8 : f32 to vector<8x8x128xf32>
    %143 = arith.mulf %139, %142 : vector<8x8x128xf32>
    %144 = arith.addf %141, %143 : vector<8x8x128xf32>
    %145 = vector.broadcast %10 : f32 to vector<8x8x128xf32>
    %146 = arith.addf %144, %145 : vector<8x8x128xf32>
    %147 = vector.broadcast %7 : f32 to vector<8x8x128xf32>
    %148 = arith.mulf %129, %147 : vector<8x8x128xf32>
    %149 = vector.broadcast %9 : f32 to vector<8x8x128xf32>
    %150 = arith.mulf %139, %149 : vector<8x8x128xf32>
    %151 = arith.addf %148, %150 : vector<8x8x128xf32>
    %152 = vector.broadcast %11 : f32 to vector<8x8x128xf32>
    %153 = arith.addf %151, %152 : vector<8x8x128xf32>
    %154 = vector.extract_strided_slice %146 {offsets = [0, 0, 0], sizes = [1, 8, 128], strides = [1, 1, 1]} : vector<8x8x128xf32> to vector<1x8x128xf32>
    %155 = vector.shape_cast %154 : vector<1x8x128xf32> to vector<8x128xf32>
    %156 = vector.shape_cast %155 : vector<8x128xf32> to vector<1x8x128xf32>
    %157 = vector.extract_strided_slice %27 {offsets = [0, 0, 0, 0], sizes = [1, 8, 1, 128], strides = [1, 1, 1, 1]} : vector<2x8x8x128xf32> to vector<1x8x1x128xf32>
    %158 = vector.shape_cast %157 : vector<1x8x1x128xf32> to vector<8x1x128xf32>
    %159 = vector.broadcast %156 : vector<1x8x128xf32> to vector<8x8x128xf32>
    %160 = vector.broadcast %158 : vector<8x1x128xf32> to vector<8x8x128xf32>
    %161 = arith.mulf %159, %160 : vector<8x8x128xf32>
    %162 = vector.extract_strided_slice %146 {offsets = [1, 0, 0], sizes = [1, 8, 128], strides = [1, 1, 1]} : vector<8x8x128xf32> to vector<1x8x128xf32>
    %163 = vector.shape_cast %162 : vector<1x8x128xf32> to vector<8x128xf32>
    %164 = vector.shape_cast %163 : vector<8x128xf32> to vector<1x8x128xf32>
    %165 = vector.extract_strided_slice %27 {offsets = [0, 0, 1, 0], sizes = [1, 8, 1, 128], strides = [1, 1, 1, 1]} : vector<2x8x8x128xf32> to vector<1x8x1x128xf32>
    %166 = vector.shape_cast %165 : vector<1x8x1x128xf32> to vector<8x1x128xf32>
    %167 = vector.broadcast %164 : vector<1x8x128xf32> to vector<8x8x128xf32>
    %168 = vector.broadcast %166 : vector<8x1x128xf32> to vector<8x8x128xf32>
    %169 = arith.mulf %167, %168 : vector<8x8x128xf32>
    %170 = arith.addf %161, %169 : vector<8x8x128xf32>
    %171 = vector.extract_strided_slice %146 {offsets = [2, 0, 0], sizes = [1, 8, 128], strides = [1, 1, 1]} : vector<8x8x128xf32> to vector<1x8x128xf32>
    %172 = vector.shape_cast %171 : vector<1x8x128xf32> to vector<8x128xf32>
    %173 = vector.shape_cast %172 : vector<8x128xf32> to vector<1x8x128xf32>
    %174 = vector.extract_strided_slice %27 {offsets = [0, 0, 2, 0], sizes = [1, 8, 1, 128], strides = [1, 1, 1, 1]} : vector<2x8x8x128xf32> to vector<1x8x1x128xf32>
    %175 = vector.shape_cast %174 : vector<1x8x1x128xf32> to vector<8x1x128xf32>
    %176 = vector.broadcast %173 : vector<1x8x128xf32> to vector<8x8x128xf32>
    %177 = vector.broadcast %175 : vector<8x1x128xf32> to vector<8x8x128xf32>
    %178 = arith.mulf %176, %177 : vector<8x8x128xf32>
    %179 = arith.addf %170, %178 : vector<8x8x128xf32>
    %180 = vector.extract_strided_slice %146 {offsets = [3, 0, 0], sizes = [1, 8, 128], strides = [1, 1, 1]} : vector<8x8x128xf32> to vector<1x8x128xf32>
    %181 = vector.shape_cast %180 : vector<1x8x128xf32> to vector<8x128xf32>
    %182 = vector.shape_cast %181 : vector<8x128xf32> to vector<1x8x128xf32>
    %183 = vector.extract_strided_slice %27 {offsets = [0, 0, 3, 0], sizes = [1, 8, 1, 128], strides = [1, 1, 1, 1]} : vector<2x8x8x128xf32> to vector<1x8x1x128xf32>
    %184 = vector.shape_cast %183 : vector<1x8x1x128xf32> to vector<8x1x128xf32>
    %185 = vector.broadcast %182 : vector<1x8x128xf32> to vector<8x8x128xf32>
    %186 = vector.broadcast %184 : vector<8x1x128xf32> to vector<8x8x128xf32>
    %187 = arith.mulf %185, %186 : vector<8x8x128xf32>
    %188 = arith.addf %179, %187 : vector<8x8x128xf32>
    %189 = vector.extract_strided_slice %146 {offsets = [4, 0, 0], sizes = [1, 8, 128], strides = [1, 1, 1]} : vector<8x8x128xf32> to vector<1x8x128xf32>
    %190 = vector.shape_cast %189 : vector<1x8x128xf32> to vector<8x128xf32>
    %191 = vector.shape_cast %190 : vector<8x128xf32> to vector<1x8x128xf32>
    %192 = vector.extract_strided_slice %27 {offsets = [0, 0, 4, 0], sizes = [1, 8, 1, 128], strides = [1, 1, 1, 1]} : vector<2x8x8x128xf32> to vector<1x8x1x128xf32>
    %193 = vector.shape_cast %192 : vector<1x8x1x128xf32> to vector<8x1x128xf32>
    %194 = vector.broadcast %191 : vector<1x8x128xf32> to vector<8x8x128xf32>
    %195 = vector.broadcast %193 : vector<8x1x128xf32> to vector<8x8x128xf32>
    %196 = arith.mulf %194, %195 : vector<8x8x128xf32>
    %197 = arith.addf %188, %196 : vector<8x8x128xf32>
    %198 = vector.extract_strided_slice %146 {offsets = [5, 0, 0], sizes = [1, 8, 128], strides = [1, 1, 1]} : vector<8x8x128xf32> to vector<1x8x128xf32>
    %199 = vector.shape_cast %198 : vector<1x8x128xf32> to vector<8x128xf32>
    %200 = vector.shape_cast %199 : vector<8x128xf32> to vector<1x8x128xf32>
    %201 = vector.extract_strided_slice %27 {offsets = [0, 0, 5, 0], sizes = [1, 8, 1, 128], strides = [1, 1, 1, 1]} : vector<2x8x8x128xf32> to vector<1x8x1x128xf32>
    %202 = vector.shape_cast %201 : vector<1x8x1x128xf32> to vector<8x1x128xf32>
    %203 = vector.broadcast %200 : vector<1x8x128xf32> to vector<8x8x128xf32>
    %204 = vector.broadcast %202 : vector<8x1x128xf32> to vector<8x8x128xf32>
    %205 = arith.mulf %203, %204 : vector<8x8x128xf32>
    %206 = arith.addf %197, %205 : vector<8x8x128xf32>
    %207 = vector.extract_strided_slice %146 {offsets = [6, 0, 0], sizes = [1, 8, 128], strides = [1, 1, 1]} : vector<8x8x128xf32> to vector<1x8x128xf32>
    %208 = vector.shape_cast %207 : vector<1x8x128xf32> to vector<8x128xf32>
    %209 = vector.shape_cast %208 : vector<8x128xf32> to vector<1x8x128xf32>
    %210 = vector.extract_strided_slice %27 {offsets = [0, 0, 6, 0], sizes = [1, 8, 1, 128], strides = [1, 1, 1, 1]} : vector<2x8x8x128xf32> to vector<1x8x1x128xf32>
    %211 = vector.shape_cast %210 : vector<1x8x1x128xf32> to vector<8x1x128xf32>
    %212 = vector.broadcast %209 : vector<1x8x128xf32> to vector<8x8x128xf32>
    %213 = vector.broadcast %211 : vector<8x1x128xf32> to vector<8x8x128xf32>
    %214 = arith.mulf %212, %213 : vector<8x8x128xf32>
    %215 = arith.addf %206, %214 : vector<8x8x128xf32>
    %216 = vector.extract_strided_slice %146 {offsets = [7, 0, 0], sizes = [1, 8, 128], strides = [1, 1, 1]} : vector<8x8x128xf32> to vector<1x8x128xf32>
    %217 = vector.shape_cast %216 : vector<1x8x128xf32> to vector<8x128xf32>
    %218 = vector.shape_cast %217 : vector<8x128xf32> to vector<1x8x128xf32>
    %219 = vector.extract_strided_slice %27 {offsets = [0, 0, 7, 0], sizes = [1, 8, 1, 128], strides = [1, 1, 1, 1]} : vector<2x8x8x128xf32> to vector<1x8x1x128xf32>
    %220 = vector.shape_cast %219 : vector<1x8x1x128xf32> to vector<8x1x128xf32>
    %221 = vector.broadcast %218 : vector<1x8x128xf32> to vector<8x8x128xf32>
    %222 = vector.broadcast %220 : vector<8x1x128xf32> to vector<8x8x128xf32>
    %223 = arith.mulf %221, %222 : vector<8x8x128xf32>
    %224 = arith.addf %215, %223 : vector<8x8x128xf32>
    %225 = vector.extract_strided_slice %153 {offsets = [0, 0, 0], sizes = [1, 8, 128], strides = [1, 1, 1]} : vector<8x8x128xf32> to vector<1x8x128xf32>
    %226 = vector.shape_cast %225 : vector<1x8x128xf32> to vector<8x128xf32>
    %227 = vector.shape_cast %226 : vector<8x128xf32> to vector<1x8x128xf32>
    %228 = vector.extract_strided_slice %27 {offsets = [1, 0, 0, 0], sizes = [1, 8, 1, 128], strides = [1, 1, 1, 1]} : vector<2x8x8x128xf32> to vector<1x8x1x128xf32>
    %229 = vector.shape_cast %228 : vector<1x8x1x128xf32> to vector<8x1x128xf32>
    %230 = vector.broadcast %227 : vector<1x8x128xf32> to vector<8x8x128xf32>
    %231 = vector.broadcast %229 : vector<8x1x128xf32> to vector<8x8x128xf32>
    %232 = arith.mulf %230, %231 : vector<8x8x128xf32>
    %233 = vector.extract_strided_slice %153 {offsets = [1, 0, 0], sizes = [1, 8, 128], strides = [1, 1, 1]} : vector<8x8x128xf32> to vector<1x8x128xf32>
    %234 = vector.shape_cast %233 : vector<1x8x128xf32> to vector<8x128xf32>
    %235 = vector.shape_cast %234 : vector<8x128xf32> to vector<1x8x128xf32>
    %236 = vector.extract_strided_slice %27 {offsets = [1, 0, 1, 0], sizes = [1, 8, 1, 128], strides = [1, 1, 1, 1]} : vector<2x8x8x128xf32> to vector<1x8x1x128xf32>
    %237 = vector.shape_cast %236 : vector<1x8x1x128xf32> to vector<8x1x128xf32>
    %238 = vector.broadcast %235 : vector<1x8x128xf32> to vector<8x8x128xf32>
    %239 = vector.broadcast %237 : vector<8x1x128xf32> to vector<8x8x128xf32>
    %240 = arith.mulf %238, %239 : vector<8x8x128xf32>
    %241 = arith.addf %232, %240 : vector<8x8x128xf32>
    %242 = vector.extract_strided_slice %153 {offsets = [2, 0, 0], sizes = [1, 8, 128], strides = [1, 1, 1]} : vector<8x8x128xf32> to vector<1x8x128xf32>
    %243 = vector.shape_cast %242 : vector<1x8x128xf32> to vector<8x128xf32>
    %244 = vector.shape_cast %243 : vector<8x128xf32> to vector<1x8x128xf32>
    %245 = vector.extract_strided_slice %27 {offsets = [1, 0, 2, 0], sizes = [1, 8, 1, 128], strides = [1, 1, 1, 1]} : vector<2x8x8x128xf32> to vector<1x8x1x128xf32>
    %246 = vector.shape_cast %245 : vector<1x8x1x128xf32> to vector<8x1x128xf32>
    %247 = vector.broadcast %244 : vector<1x8x128xf32> to vector<8x8x128xf32>
    %248 = vector.broadcast %246 : vector<8x1x128xf32> to vector<8x8x128xf32>
    %249 = arith.mulf %247, %248 : vector<8x8x128xf32>
    %250 = arith.addf %241, %249 : vector<8x8x128xf32>
    %251 = vector.extract_strided_slice %153 {offsets = [3, 0, 0], sizes = [1, 8, 128], strides = [1, 1, 1]} : vector<8x8x128xf32> to vector<1x8x128xf32>
    %252 = vector.shape_cast %251 : vector<1x8x128xf32> to vector<8x128xf32>
    %253 = vector.shape_cast %252 : vector<8x128xf32> to vector<1x8x128xf32>
    %254 = vector.extract_strided_slice %27 {offsets = [1, 0, 3, 0], sizes = [1, 8, 1, 128], strides = [1, 1, 1, 1]} : vector<2x8x8x128xf32> to vector<1x8x1x128xf32>
    %255 = vector.shape_cast %254 : vector<1x8x1x128xf32> to vector<8x1x128xf32>
    %256 = vector.broadcast %253 : vector<1x8x128xf32> to vector<8x8x128xf32>
    %257 = vector.broadcast %255 : vector<8x1x128xf32> to vector<8x8x128xf32>
    %258 = arith.mulf %256, %257 : vector<8x8x128xf32>
    %259 = arith.addf %250, %258 : vector<8x8x128xf32>
    %260 = vector.extract_strided_slice %153 {offsets = [4, 0, 0], sizes = [1, 8, 128], strides = [1, 1, 1]} : vector<8x8x128xf32> to vector<1x8x128xf32>
    %261 = vector.shape_cast %260 : vector<1x8x128xf32> to vector<8x128xf32>
    %262 = vector.shape_cast %261 : vector<8x128xf32> to vector<1x8x128xf32>
    %263 = vector.extract_strided_slice %27 {offsets = [1, 0, 4, 0], sizes = [1, 8, 1, 128], strides = [1, 1, 1, 1]} : vector<2x8x8x128xf32> to vector<1x8x1x128xf32>
    %264 = vector.shape_cast %263 : vector<1x8x1x128xf32> to vector<8x1x128xf32>
    %265 = vector.broadcast %262 : vector<1x8x128xf32> to vector<8x8x128xf32>
    %266 = vector.broadcast %264 : vector<8x1x128xf32> to vector<8x8x128xf32>
    %267 = arith.mulf %265, %266 : vector<8x8x128xf32>
    %268 = arith.addf %259, %267 : vector<8x8x128xf32>
    %269 = vector.extract_strided_slice %153 {offsets = [5, 0, 0], sizes = [1, 8, 128], strides = [1, 1, 1]} : vector<8x8x128xf32> to vector<1x8x128xf32>
    %270 = vector.shape_cast %269 : vector<1x8x128xf32> to vector<8x128xf32>
    %271 = vector.shape_cast %270 : vector<8x128xf32> to vector<1x8x128xf32>
    %272 = vector.extract_strided_slice %27 {offsets = [1, 0, 5, 0], sizes = [1, 8, 1, 128], strides = [1, 1, 1, 1]} : vector<2x8x8x128xf32> to vector<1x8x1x128xf32>
    %273 = vector.shape_cast %272 : vector<1x8x1x128xf32> to vector<8x1x128xf32>
    %274 = vector.broadcast %271 : vector<1x8x128xf32> to vector<8x8x128xf32>
    %275 = vector.broadcast %273 : vector<8x1x128xf32> to vector<8x8x128xf32>
    %276 = arith.mulf %274, %275 : vector<8x8x128xf32>
    %277 = arith.addf %268, %276 : vector<8x8x128xf32>
    %278 = vector.extract_strided_slice %153 {offsets = [6, 0, 0], sizes = [1, 8, 128], strides = [1, 1, 1]} : vector<8x8x128xf32> to vector<1x8x128xf32>
    %279 = vector.shape_cast %278 : vector<1x8x128xf32> to vector<8x128xf32>
    %280 = vector.shape_cast %279 : vector<8x128xf32> to vector<1x8x128xf32>
    %281 = vector.extract_strided_slice %27 {offsets = [1, 0, 6, 0], sizes = [1, 8, 1, 128], strides = [1, 1, 1, 1]} : vector<2x8x8x128xf32> to vector<1x8x1x128xf32>
    %282 = vector.shape_cast %281 : vector<1x8x1x128xf32> to vector<8x1x128xf32>
    %283 = vector.broadcast %280 : vector<1x8x128xf32> to vector<8x8x128xf32>
    %284 = vector.broadcast %282 : vector<8x1x128xf32> to vector<8x8x128xf32>
    %285 = arith.mulf %283, %284 : vector<8x8x128xf32>
    %286 = arith.addf %277, %285 : vector<8x8x128xf32>
    %287 = vector.extract_strided_slice %153 {offsets = [7, 0, 0], sizes = [1, 8, 128], strides = [1, 1, 1]} : vector<8x8x128xf32> to vector<1x8x128xf32>
    %288 = vector.shape_cast %287 : vector<1x8x128xf32> to vector<8x128xf32>
    %289 = vector.shape_cast %288 : vector<8x128xf32> to vector<1x8x128xf32>
    %290 = vector.extract_strided_slice %27 {offsets = [1, 0, 7, 0], sizes = [1, 8, 1, 128], strides = [1, 1, 1, 1]} : vector<2x8x8x128xf32> to vector<1x8x1x128xf32>
    %291 = vector.shape_cast %290 : vector<1x8x1x128xf32> to vector<8x1x128xf32>
    %292 = vector.broadcast %289 : vector<1x8x128xf32> to vector<8x8x128xf32>
    %293 = vector.broadcast %291 : vector<8x1x128xf32> to vector<8x8x128xf32>
    %294 = arith.mulf %292, %293 : vector<8x8x128xf32>
    %295 = arith.addf %286, %294 : vector<8x8x128xf32>
    %296 = tpu.concatenate %224, %295 in 0 : vector<8x8x128xf32>, vector<8x8x128xf32> -> vector<16x8x128xf32>
    %cst_32 = arith.constant dense<0.000000e+00> : vector<8x128xf32>
    %297 = vector.multi_reduction <add>, %296, %cst_32 [0] : vector<16x8x128xf32> to vector<8x128xf32>
    %298 = vector.shape_cast %297 : vector<8x128xf32> to vector<1x8x128xf32>
    %cst_33 = arith.constant 1.600000e+01 : f32
    %299 = vector.broadcast %cst_33 : f32 to vector<1x8x128xf32>
    %300 = arith.divf %298, %299 : vector<1x8x128xf32>
    %301 = vector.broadcast %300 : vector<1x8x128xf32> to vector<16x8x128xf32>
    %302 = arith.subf %296, %301 : vector<16x8x128xf32>
    %303 = arith.mulf %302, %302 : vector<16x8x128xf32>
    %cst_34 = arith.constant dense<0.000000e+00> : vector<8x128xf32>
    %304 = vector.multi_reduction <add>, %303, %cst_34 [0] : vector<16x8x128xf32> to vector<8x128xf32>
    %305 = vector.shape_cast %304 : vector<8x128xf32> to vector<1x8x128xf32>
    %cst_35 = arith.constant 1.600000e+01 : f32
    %306 = vector.broadcast %cst_35 : f32 to vector<1x8x128xf32>
    %307 = arith.divf %305, %306 : vector<1x8x128xf32>
    %308 = vector.broadcast %300 : vector<1x8x128xf32> to vector<16x8x128xf32>
    %309 = arith.subf %296, %308 : vector<16x8x128xf32>
    %cst_36 = arith.constant 9.99999974E-6 : f32
    %310 = vector.broadcast %cst_36 : f32 to vector<1x8x128xf32>
    %311 = arith.addf %307, %310 : vector<1x8x128xf32>
    %312 = math.rsqrt %311 : vector<1x8x128xf32>
    %313 = vector.broadcast %312 : vector<1x8x128xf32> to vector<16x8x128xf32>
    %314 = arith.mulf %309, %313 : vector<16x8x128xf32>
    %315 = vector.broadcast %13 : vector<16x8x1xf32> to vector<16x8x128xf32>
    %316 = arith.mulf %314, %315 : vector<16x8x128xf32>
    %317 = vector.broadcast %15 : vector<16x8x1xf32> to vector<16x8x128xf32>
    %318 = arith.addf %316, %317 : vector<16x8x128xf32>
    %319 = arith.negf %318 : vector<16x8x128xf32>
    %320 = math.exp %319 : vector<16x8x128xf32>
    %cst_37 = arith.constant 1.000000e+00 : f32
    %321 = vector.broadcast %cst_37 : f32 to vector<16x8x128xf32>
    %322 = arith.addf %321, %320 : vector<16x8x128xf32>
    %323 = arith.divf %321, %322 : vector<16x8x128xf32>
    %324 = arith.mulf %318, %323 : vector<16x8x128xf32>
    %325 = vector.shape_cast %324 : vector<16x8x128xf32> to vector<128x128xf32>
    %c0_38 = arith.constant 0 : index
    %c0_39 = arith.constant 0 : index
    %326 = vector.load %arg6[%c0_38, %c0_39] : memref<64x128xf32, #tpu.memory_space<vmem>>, vector<64x128xf32>
    %cst_40 = arith.constant dense<0.000000e+00> : vector<64x128xf32>
    %327 = tpu.matmul %326, %325, %cst_40 {dimension_numbers = #tpu.dot_dimension_numbers<[1], [0], [0], [1], [0, 0, 1, 1], [], []>} : vector<64x128xf32>, vector<128x128xf32>, vector<64x128xf32> -> vector<64x128xf32>
    %328 = vector.broadcast %16 : vector<64x1xf32> to vector<64x128xf32>
    %329 = arith.addf %327, %328 : vector<64x128xf32>
    %330 = arith.index_cast %c0_i32 : i32 to index
    %c0_41 = arith.constant 0 : index
    %c0_42 = arith.constant 0 : index
    %331 = vector.load %arg8[%330, %c0_41, %c0_42] : memref<1x64x128xf32, #tpu.memory_space<vmem>>, vector<1x64x128xf32>
    %332 = vector.shape_cast %331 : vector<1x64x128xf32> to vector<64x128xf32>
    %333 = vector.shape_cast %329 : vector<64x128xf32> to vector<1x64x128xf32>
    tpu.vector_store %arg8[%330, %c0_41, %c0_42], %333 {strides = array<i32>} : memref<1x64x128xf32, #tpu.memory_space<vmem>>, vector<1x64x128xf32>,
    %c1_i32 = arith.constant 1 : i32
    return
  }
  func.func @transform_0(%arg0: i32) -> (i32, i32, i32) {
    %c0_i32 = arith.constant 0 : i32
    %c0_i32_0 = arith.constant 0 : i32
    %c0_i32_1 = arith.constant 0 : i32
    return %arg0, %c0_i32, %c0_i32_0 : i32, i32, i32
  }
  func.func @transform_1(%arg0: i32) -> (i32, i32) {
    %c0_i32 = arith.constant 0 : i32
    %c0_i32_0 = arith.constant 0 : i32
    %c0_i32_1 = arith.constant 0 : i32
    return %c0_i32, %c0_i32_0 : i32, i32
  }
  func.func @transform_2(%arg0: i32) -> (i32, i32) {
    %c0_i32 = arith.constant 0 : i32
    %c0_i32_0 = arith.constant 0 : i32
    %c0_i32_1 = arith.constant 0 : i32
    return %c0_i32, %c0_i32_0 : i32, i32
  }
  func.func @transform_3(%arg0: i32) -> (i32, i32) {
    %c0_i32 = arith.constant 0 : i32
    %c0_i32_0 = arith.constant 0 : i32
    %c0_i32_1 = arith.constant 0 : i32
    return %c0_i32, %c0_i32_0 : i32, i32
  }
  func.func @transform_4(%arg0: i32) -> (i32, i32) {
    %c0_i32 = arith.constant 0 : i32
    %c0_i32_0 = arith.constant 0 : i32
    %c0_i32_1 = arith.constant 0 : i32
    return %c0_i32, %c0_i32_0 : i32, i32
  }
  func.func @transform_5(%arg0: i32) -> (i32, i32) {
    %c0_i32 = arith.constant 0 : i32
    %c0_i32_0 = arith.constant 0 : i32
    %c0_i32_1 = arith.constant 0 : i32
    return %c0_i32, %c0_i32_0 : i32, i32
  }
  func.func @transform_6(%arg0: i32) -> (i32, i32) {
    %c0_i32 = arith.constant 0 : i32
    %c0_i32_0 = arith.constant 0 : i32
    %c0_i32_1 = arith.constant 0 : i32
    return %c0_i32, %c0_i32_0 : i32, i32
  }
  func.func @transform_7(%arg0: i32) -> (i32, i32, i32) {
    %c0_i32 = arith.constant 0 : i32
    %c0_i32_0 = arith.constant 0 : i32
    %c0_i32_1 = arith.constant 0 : i32
    return %arg0, %c0_i32, %c0_i32_0 : i32, i32, i32
  }
}

</mosaic_0001>

<llo_original>
// kernel: tile.8
$region0: #{tile.8}
  #allocation0 [shape = 's32[1]{0}', space=sflag, size = 0x4, scoped, tag = 'scoped memory for tile.8']
  %s0 = inlined_call_operand.vmem [shape: f32[8], index: 0, kind: input, shape index: {}]
  %s1 = inlined_call_operand.vmem [shape: f32[8,8], index: 1, kind: output, shape index: {}]
  // Predicated region
  $region2: #{tile.8} parent=0 // pred_check
    _
  $region3: #{tile.8} parent=0 // pred_check_branch
    %3 = sbr.rel (0) target = $region5
  $region4: #{tile.8} parent=0 // pred_region
    _
  $region5: #{tile.8} parent=0 // pred_fallthru
    _
  %v4 = vld [vmem:[%s0] ss:$0 sm:$0xff]
  %5 = vst [vmem:[%s1] sm:$0xff] %v4

// kernel: tile.0
$region0: #{tile.0}
  %s0 = inlined_call_operand.vmem [shape: f32[8,8], index: 0, kind: input, shape index: {}]
  %s1 = inlined_call_operand.vmem [shape: f32[64,1], index: 1, kind: output, shape index: {}]
  %v2 = vld [vmem:[%s0] sm:$0xff]
  %vm3 = vcmask 7168
  %4 = vst.msk [vmem:[%s1] ss:$8 sm:$0xf] %vm3, %v2
  %5 = vst.msk [vmem:[%s1] ss:$8 sm:$0xf0] %vm3, %v2
  %v6 = vld [vmem:[%s0] sm:$0xff]
  %7 = vrot.lane.b32.xlu0 %v6, 127
  %v8 = vpop.permute.xlu0 %7
  %vm9 = vcmask 7168
  %s10 = scalar_lea.vmem %s1, 1
  %11 = vst.msk [vmem:[%s10] ss:$8 sm:$0xf] %vm9, %v8
  %s12 = scalar_lea.vmem %s1, 1
  %13 = vst.msk [vmem:[%s12] ss:$8 sm:$0xf0] %vm9, %v8
  %v14 = vld [vmem:[%s0] sm:$0xff]
  %15 = vrot.lane.b32.xlu0 %v14, 126
  %v16 = vpop.permute.xlu0 %15
  %vm17 = vcmask 7168
  %s18 = scalar_lea.vmem %s1, 2
  %19 = vst.msk [vmem:[%s18] ss:$8 sm:$0xf] %vm17, %v16
  %s20 = scalar_lea.vmem %s1, 2
  %21 = vst.msk [vmem:[%s20] ss:$8 sm:$0xf0] %vm17, %v16
  %v22 = vld [vmem:[%s0] sm:$0xff]
  %23 = vrot.lane.b32.xlu0 %v22, 125
  %v24 = vpop.permute.xlu0 %23
  %vm25 = vcmask 7168
  %s26 = scalar_lea.vmem %s1, 3
  %27 = vst.msk [vmem:[%s26] ss:$8 sm:$0xf] %vm25, %v24
  %s28 = scalar_lea.vmem %s1, 3
  %29 = vst.msk [vmem:[%s28] ss:$8 sm:$0xf0] %vm25, %v24
  %v30 = vld [vmem:[%s0] sm:$0xff]
  %31 = vrot.lane.b32.xlu0 %v30, 124
  %v32 = vpop.permute.xlu0 %31
  %vm33 = vcmask 7168
  %s34 = scalar_lea.vmem %s1, 4
  %35 = vst.msk [vmem:[%s34] ss:$8 sm:$0xf] %vm33, %v32
  %s36 = scalar_lea.vmem %s1, 4
  %37 = vst.msk [vmem:[%s36] ss:$8 sm:$0xf0] %vm33, %v32
  %v38 = vld [vmem:[%s0] sm:$0xff]
  %39 = vrot.lane.b32.xlu0 %v38, 123
  %v40 = vpop.permute.xlu0 %39
  %vm41 = vcmask 7168
  %s42 = scalar_lea.vmem %s1, 5
  %43 = vst.msk [vmem:[%s42] ss:$8 sm:$0xf] %vm41, %v40
  %s44 = scalar_lea.vmem %s1, 5
  %45 = vst.msk [vmem:[%s44] ss:$8 sm:$0xf0] %vm41, %v40
  %v46 = vld [vmem:[%s0] sm:$0xff]
  %47 = vrot.lane.b32.xlu0 %v46, 122
  %v48 = vpop.permute.xlu0 %47
  %vm49 = vcmask 7168
  %s50 = scalar_lea.vmem %s1, 6
  %51 = vst.msk [vmem:[%s50] ss:$8 sm:$0xf] %vm49, %v48
  %s52 = scalar_lea.vmem %s1, 6
  %53 = vst.msk [vmem:[%s52] ss:$8 sm:$0xf0] %vm49, %v48
  %v54 = vld [vmem:[%s0] sm:$0xff]
  %55 = vrot.lane.b32.xlu0 %v54, 121
  %v56 = vpop.permute.xlu0 %55
  %vm57 = vcmask 7168
  %s58 = scalar_lea.vmem %s1, 7
  %59 = vst.msk [vmem:[%s58] ss:$8 sm:$0xf] %vm57, %v56
  %s60 = scalar_lea.vmem %s1, 7
  %61 = vst.msk [vmem:[%s60] ss:$8 sm:$0xf0] %vm57, %v56

// kernel: forward.1
$region0: #{forward.1}
  #allocation0 [shape = 'u32[]', space=smem, size = 0x4, offset = 0x4, fixed_abs, tag = 'smem constant byte address 0x4 - core index']
  #allocation1 [shape = 'u32[72,128]{1,0:T(1,128)}', space=vmem, size = 0x9000, scoped, tag = 'internal scratch']
  %s0 = inlined_call_operand.vmem [shape: f32[1,72,128], index: 0, kind: input, shape index: {}]
  %s1 = inlined_call_operand.vmem [shape: f32[256,72], index: 1, kind: input, shape index: {}]
  %s2 = inlined_call_operand.vmem [shape: f32[6,2], index: 2, kind: input, shape index: {}]
  %s3 = inlined_call_operand.vmem [shape: f32[128,1], index: 3, kind: input, shape index: {}]
  %s4 = inlined_call_operand.vmem [shape: f32[128,1], index: 4, kind: input, shape index: {}]
  %s5 = inlined_call_operand.vmem [shape: f32[64,128], index: 5, kind: input, shape index: {}]
  %s6 = inlined_call_operand.vmem [shape: f32[64,1], index: 6, kind: input, shape index: {}]
  %s7 = inlined_call_operand.vmem [shape: f32[1,64,128], index: 7, kind: output, shape index: {}]
  %s8 = sld [smem:[#allocation0]]
  $region42: #{forward.1} parent=0
    _
  %s10 = ssub.s32 1, %s8
  %s11 = scalar_select 0, %s10, %s8
  $region1: #{forward.1} parent=0
    #allocation2 [shape = 'u8[4096]{0}', space=smem, size = 0x1000, scoped, tag = 'input window, operand 2, single buffered']
    #allocation3 [shape = 's32[1]{0}', space=sflag, size = 0x4, scoped, tag = 'scoped memory for forward.1']
    %12 = vsyncpa [#allocation3], 0
    // Predicated region
    $region2: #{forward.1} parent=1 // pred_check
      _
    $region3: #{forward.1} parent=1 // pred_check_branch
      %14 = sbr.rel (0) target = $region5
    $region4: #{forward.1} parent=1 // pred_region
      _
    $region5: #{forward.1} parent=1 // pred_fallthru
      _
    // Predicated region
    $region6: #{forward.1} parent=1 // pred_check
      _
    $region7: #{forward.1} parent=1 // pred_check_branch
      %16 = sbr.rel (0) target = $region9
    $region8: #{forward.1} parent=1 // pred_region
      _
    $region9: #{forward.1} parent=1 // pred_fallthru
      _
    // Predicated region
    $region10: #{forward.1} parent=1 // pred_check
      _
    $region11: #{forward.1} parent=1 // pred_check_branch
      %18 = sbr.rel (0) target = $region13
    $region12: #{forward.1} parent=1 // pred_region
      %20 = vsyncadd [#allocation3], 0
      %s22 = sshll.u32 %s2, 4
      %s23 = int_to_ptr.vmem [resolvable:$true] %s22
      %25 = dma.vmem_to_smem %s23, 128, [#allocation2], [#allocation3]
    $region13: #{forward.1} parent=1 // pred_fallthru
      _
    // Predicated region
    $region14: #{forward.1} parent=1 // pred_check
      _
    $region15: #{forward.1} parent=1 // pred_check_branch
      %27 = sbr.rel (0) target = $region17
    $region16: #{forward.1} parent=1 // pred_region
      _
    $region17: #{forward.1} parent=1 // pred_fallthru
      _
    // Predicated region
    $region18: #{forward.1} parent=1 // pred_check
      _
    $region19: #{forward.1} parent=1 // pred_check_branch
      %29 = sbr.rel (0) target = $region21
    $region20: #{forward.1} parent=1 // pred_region
      _
    $region21: #{forward.1} parent=1 // pred_fallthru
      _
    // Predicated region
    $region22: #{forward.1} parent=1 // pred_check
      _
    $region23: #{forward.1} parent=1 // pred_check_branch
      %31 = sbr.rel (0) target = $region25
    $region24: #{forward.1} parent=1 // pred_region
      _
    $region25: #{forward.1} parent=1 // pred_fallthru
      _
    // Predicated region
    $region26: #{forward.1} parent=1 // pred_check
      _
    $region27: #{forward.1} parent=1 // pred_check_branch
      %33 = sbr.rel (0) target = $region29
    $region28: #{forward.1} parent=1 // pred_region
      _
    $region29: #{forward.1} parent=1 // pred_fallthru
      _
    // Predicated region
    $region30: #{forward.1} parent=1 // pred_check
      _
    $region31: #{forward.1} parent=1 // pred_check_branch
      %35 = sbr.rel (0) target = $region33
    $region32: #{forward.1} parent=1 // pred_region
      %37 = dma.done [#allocation3], 128
    $region33: #{forward.1} parent=1 // pred_fallthru
      _
    %38 = sfence
    %s39 = sld [smem:[#allocation2]]
    %s40 = sld [smem:[#allocation2 + $0x1]]
    %s41 = sld [smem:[#allocation2 + $0x80]]
    %s42 = sld [smem:[#allocation2 + $0x81]]
    %s43 = sld [smem:[#allocation2 + $0x100]]
    %s44 = sld [smem:[#allocation2 + $0x101]]
    %s45 = sld [smem:[#allocation2 + $0x180]]
    %s46 = sld [smem:[#allocation2 + $0x181]]
    %s47 = sld [smem:[#allocation2 + $0x200]]
    %s48 = sld [smem:[#allocation2 + $0x201]]
    %s49 = sld [smem:[#allocation2 + $0x280]]
    %s50 = sld [smem:[#allocation2 + $0x281]]
    %v51 = vld [vmem:[%s3] sm:$0xff]
    %v52 = vld [vmem:[%s3 + $0x8] sm:$0xff]
    %v53 = vld [vmem:[%s3 + $0x10] sm:$0xff]
    %v54 = vld [vmem:[%s3 + $0x18] sm:$0xff]
    %v55 = vld [vmem:[%s3 + $0x20] sm:$0xff]
    %v56 = vld [vmem:[%s3 + $0x28] sm:$0xff]
    %v57 = vld [vmem:[%s3 + $0x30] sm:$0xff]
    %v58 = vld [vmem:[%s3 + $0x38] sm:$0xff]
    %v59 = vld [vmem:[%s3 + $0x40] sm:$0xff]
    %v60 = vld [vmem:[%s3 + $0x48] sm:$0xff]
    %v61 = vld [vmem:[%s3 + $0x50] sm:$0xff]
    %v62 = vld [vmem:[%s3 + $0x58] sm:$0xff]
    %v63 = vld [vmem:[%s3 + $0x60] sm:$0xff]
    %v64 = vld [vmem:[%s3 + $0x68] sm:$0xff]
    %v65 = vld [vmem:[%s3 + $0x70] sm:$0xff]
    %v66 = vld [vmem:[%s3 + $0x78] sm:$0xff]
    %v67 = vld [vmem:[%s4] sm:$0xff]
    %v68 = vld [vmem:[%s4 + $0x8] sm:$0xff]
    %v69 = vld [vmem:[%s4 + $0x10] sm:$0xff]
    %v70 = vld [vmem:[%s4 + $0x18] sm:$0xff]
    %v71 = vld [vmem:[%s4 + $0x20] sm:$0xff]
    %v72 = vld [vmem:[%s4 + $0x28] sm:$0xff]
    %v73 = vld [vmem:[%s4 + $0x30] sm:$0xff]
    %v74 = vld [vmem:[%s4 + $0x38] sm:$0xff]
    %v75 = vld [vmem:[%s4 + $0x40] sm:$0xff]
    %v76 = vld [vmem:[%s4 + $0x48] sm:$0xff]
    %v77 = vld [vmem:[%s4 + $0x50] sm:$0xff]
    %v78 = vld [vmem:[%s4 + $0x58] sm:$0xff]
    %v79 = vld [vmem:[%s4 + $0x60] sm:$0xff]
    %v80 = vld [vmem:[%s4 + $0x68] sm:$0xff]
    %v81 = vld [vmem:[%s4 + $0x70] sm:$0xff]
    %v82 = vld [vmem:[%s4 + $0x78] sm:$0xff]
    %v83 = vld [vmem:[%s6] sm:$0xff]
    %v84 = vld [vmem:[%s6 + $0x8] sm:$0xff]
    %v85 = vld [vmem:[%s6 + $0x10] sm:$0xff]
    %v86 = vld [vmem:[%s6 + $0x18] sm:$0xff]
    %v87 = vld [vmem:[%s6 + $0x20] sm:$0xff]
    %v88 = vld [vmem:[%s6 + $0x28] sm:$0xff]
    %v89 = vld [vmem:[%s6 + $0x30] sm:$0xff]
    %v90 = vld [vmem:[%s6 + $0x38] sm:$0xff]
    %v91 = vld [vmem:[%s0] sm:$0xff]
    %v92 = vld [vmem:[%s0 + $0x8] sm:$0xff]
    %v93 = vld [vmem:[%s0 + $0x10] sm:$0xff]
    %v94 = vld [vmem:[%s0 + $0x18] sm:$0xff]
    %v95 = vld [vmem:[%s0 + $0x20] sm:$0xff]
    %v96 = vld [vmem:[%s0 + $0x28] sm:$0xff]
    %v97 = vld [vmem:[%s0 + $0x30] sm:$0xff]
    %v98 = vld [vmem:[%s0 + $0x38] sm:$0xff]
    %v99 = vld [vmem:[%s0 + $0x40] sm:$0xff]
    %v100 = vld [vmem:[%s1] sm:$0xff]
    %v101 = vld [vmem:[%s1 + $0x8] sm:$0xff]
    %v102 = vld [vmem:[%s1 + $0x10] sm:$0xff]
    %v103 = vld [vmem:[%s1 + $0x18] sm:$0xff]
    %v104 = vld [vmem:[%s1 + $0x20] sm:$0xff]
    %v105 = vld [vmem:[%s1 + $0x28] sm:$0xff]
    %v106 = vld [vmem:[%s1 + $0x30] sm:$0xff]
    %v107 = vld [vmem:[%s1 + $0x38] sm:$0xff]
    %v108 = vld [vmem:[%s1 + $0x40] sm:$0xff]
    %v109 = vld [vmem:[%s1 + $0x48] sm:$0xff]
    %v110 = vld [vmem:[%s1 + $0x50] sm:$0xff]
    %v111 = vld [vmem:[%s1 + $0x58] sm:$0xff]
    %v112 = vld [vmem:[%s1 + $0x60] sm:$0xff]
    %v113 = vld [vmem:[%s1 + $0x68] sm:$0xff]
    %v114 = vld [vmem:[%s1 + $0x70] sm:$0xff]
    %v115 = vld [vmem:[%s1 + $0x78] sm:$0xff]
    %v116 = vld [vmem:[%s1 + $0x80] sm:$0xff]
    %v117 = vld [vmem:[%s1 + $0x88] sm:$0xff]
    %v118 = vld [vmem:[%s1 + $0x90] sm:$0xff]
    %v119 = vld [vmem:[%s1 + $0x98] sm:$0xff]
    %v120 = vld [vmem:[%s1 + $0xa0] sm:$0xff]
    %v121 = vld [vmem:[%s1 + $0xa8] sm:$0xff]
    %v122 = vld [vmem:[%s1 + $0xb0] sm:$0xff]
    %v123 = vld [vmem:[%s1 + $0xb8] sm:$0xff]
    %v124 = vld [vmem:[%s1 + $0xc0] sm:$0xff]
    %v125 = vld [vmem:[%s1 + $0xc8] sm:$0xff]
    %v126 = vld [vmem:[%s1 + $0xd0] sm:$0xff]
    %v127 = vld [vmem:[%s1 + $0xd8] sm:$0xff]
    %v128 = vld [vmem:[%s1 + $0xe0] sm:$0xff]
    %v129 = vld [vmem:[%s1 + $0xe8] sm:$0xff]
    %v130 = vld [vmem:[%s1 + $0xf0] sm:$0xff]
    %v131 = vld [vmem:[%s1 + $0xf8] sm:$0xff]
    %vm132 = vcmask 588800
    %v134 = vsel %vm132, %v100, 0
    %v137 = vsel %vm132, %v101, 0
    %v140 = vsel %vm132, %v102, 0
    %v143 = vsel %vm132, %v103, 0
    %v146 = vsel %vm132, %v104, 0
    %v149 = vsel %vm132, %v105, 0
    %v152 = vsel %vm132, %v106, 0
    %v155 = vsel %vm132, %v107, 0
    %v158 = vsel %vm132, %v108, 0
    %v161 = vsel %vm132, %v109, 0
    %v164 = vsel %vm132, %v110, 0
    %v167 = vsel %vm132, %v111, 0
    %v170 = vsel %vm132, %v112, 0
    %v173 = vsel %vm132, %v113, 0
    %v176 = vsel %vm132, %v114, 0
    %v179 = vsel %vm132, %v115, 0
    %v182 = vsel %vm132, %v116, 0
    %v185 = vsel %vm132, %v117, 0
    %v188 = vsel %vm132, %v118, 0
    %v191 = vsel %vm132, %v119, 0
    %v194 = vsel %vm132, %v120, 0
    %v197 = vsel %vm132, %v121, 0
    %v200 = vsel %vm132, %v122, 0
    %v203 = vsel %vm132, %v123, 0
    %v206 = vsel %vm132, %v124, 0
    %v209 = vsel %vm132, %v125, 0
    %v212 = vsel %vm132, %v126, 0
    %v215 = vsel %vm132, %v127, 0
    %v218 = vsel %vm132, %v128, 0
    %v221 = vsel %vm132, %v129, 0
    %v224 = vsel %vm132, %v130, 0
    %v227 = vsel %vm132, %v131, 0
    %229 = vmatpush.msra.mxu0 0.0
    %230 = vmatpush.msra.mxu0 0.0
    %231 = vmatpush.msra.mxu0 0.0
    %232 = vmatpush.msra.mxu0 0.0
    %233 = vmatpush.msra.mxu0 0.0
    %234 = vmatpush.msra.mxu0 0.0
    %235 = vmatpush.msra.mxu0 0.0
    %236 = vmatpush.msra.mxu0 %v99
    %237 = vmatpush.msra.mxu0 %v98
    %238 = vmatpush.msra.mxu0 %v97
    %239 = vmatpush.msra.mxu0 %v96
    %240 = vmatpush.msra.mxu0 %v95
    %241 = vmatpush.msra.mxu0 %v94
    %242 = vmatpush.msra.mxu0 %v93
    %243 = vmatpush.msra.mxu0 %v92
    %244 = vmatpush.msra.mxu0 %v91
    %245 = vmatmul.f32.gmra.mxu0 %v134
    %v246 = vpop.f32.mrf.mxu0
    %v247 = vadd.f32 0.0, %v246
    %248 = vmatmul.f32.gmra.mxu0 %v137
    %v249 = vpop.f32.mrf.mxu0
    %v250 = vadd.f32 0.0, %v249
    %251 = vmatmul.f32.gmra.mxu0 %v140
    %v252 = vpop.f32.mrf.mxu0
    %v253 = vadd.f32 0.0, %v252
    %254 = vmatmul.f32.gmra.mxu0 %v143
    %v255 = vpop.f32.mrf.mxu0
    %v256 = vadd.f32 0.0, %v255
    %257 = vmatmul.f32.gmra.mxu0 %v146
    %v258 = vpop.f32.mrf.mxu0
    %v259 = vadd.f32 0.0, %v258
    %260 = vmatmul.f32.gmra.mxu0 %v149
    %v261 = vpop.f32.mrf.mxu0
    %v262 = vadd.f32 0.0, %v261
    %263 = vmatmul.f32.gmra.mxu0 %v152
    %v264 = vpop.f32.mrf.mxu0
    %v265 = vadd.f32 0.0, %v264
    %266 = vmatmul.f32.gmra.mxu0 %v155
    %v267 = vpop.f32.mrf.mxu0
    %v268 = vadd.f32 0.0, %v267
    %269 = vmatmul.f32.gmra.mxu0 %v158
    %v270 = vpop.f32.mrf.mxu0
    %v271 = vadd.f32 0.0, %v270
    %272 = vmatmul.f32.gmra.mxu0 %v161
    %v273 = vpop.f32.mrf.mxu0
    %v274 = vadd.f32 0.0, %v273
    %275 = vmatmul.f32.gmra.mxu0 %v164
    %v276 = vpop.f32.mrf.mxu0
    %v277 = vadd.f32 0.0, %v276
    %278 = vmatmul.f32.gmra.mxu0 %v167
    %v279 = vpop.f32.mrf.mxu0
    %v280 = vadd.f32 0.0, %v279
    %281 = vmatmul.f32.gmra.mxu0 %v170
    %v282 = vpop.f32.mrf.mxu0
    %v283 = vadd.f32 0.0, %v282
    %284 = vmatmul.f32.gmra.mxu0 %v173
    %v285 = vpop.f32.mrf.mxu0
    %v286 = vadd.f32 0.0, %v285
    %287 = vmatmul.f32.gmra.mxu0 %v176
    %v288 = vpop.f32.mrf.mxu0
    %v289 = vadd.f32 0.0, %v288
    %290 = vmatmul.f32.gmra.mxu0 %v179
    %v291 = vpop.f32.mrf.mxu0
    %v292 = vadd.f32 0.0, %v291
    %293 = vmatmul.f32.gmra.mxu0 %v182
    %v294 = vpop.f32.mrf.mxu0
    %v295 = vadd.f32 0.0, %v294
    %296 = vmatmul.f32.gmra.mxu0 %v185
    %v297 = vpop.f32.mrf.mxu0
    %v298 = vadd.f32 0.0, %v297
    %299 = vmatmul.f32.gmra.mxu0 %v188
    %v300 = vpop.f32.mrf.mxu0
    %v301 = vadd.f32 0.0, %v300
    %302 = vmatmul.f32.gmra.mxu0 %v191
    %v303 = vpop.f32.mrf.mxu0
    %v304 = vadd.f32 0.0, %v303
    %305 = vmatmul.f32.gmra.mxu0 %v194
    %v306 = vpop.f32.mrf.mxu0
    %v307 = vadd.f32 0.0, %v306
    %308 = vmatmul.f32.gmra.mxu0 %v197
    %v309 = vpop.f32.mrf.mxu0
    %v310 = vadd.f32 0.0, %v309
    %311 = vmatmul.f32.gmra.mxu0 %v200
    %v312 = vpop.f32.mrf.mxu0
    %v313 = vadd.f32 0.0, %v312
    %314 = vmatmul.f32.gmra.mxu0 %v203
    %v315 = vpop.f32.mrf.mxu0
    %v316 = vadd.f32 0.0, %v315
    %317 = vmatmul.f32.gmra.mxu0 %v206
    %v318 = vpop.f32.mrf.mxu0
    %v319 = vadd.f32 0.0, %v318
    %320 = vmatmul.f32.gmra.mxu0 %v209
    %v321 = vpop.f32.mrf.mxu0
    %v322 = vadd.f32 0.0, %v321
    %323 = vmatmul.f32.gmra.mxu0 %v212
    %v324 = vpop.f32.mrf.mxu0
    %v325 = vadd.f32 0.0, %v324
    %326 = vmatmul.f32.gmra.mxu0 %v215
    %v327 = vpop.f32.mrf.mxu0
    %v328 = vadd.f32 0.0, %v327
    %329 = vmatmul.f32.gmra.mxu0 %v218
    %v330 = vpop.f32.mrf.mxu0
    %v331 = vadd.f32 0.0, %v330
    %332 = vmatmul.f32.gmra.mxu0 %v221
    %v333 = vpop.f32.mrf.mxu0
    %v334 = vadd.f32 0.0, %v333
    %335 = vmatmul.f32.gmra.mxu0 %v224
    %v336 = vpop.f32.mrf.mxu0
    %v337 = vadd.f32 0.0, %v336
    %338 = vmatmul.f32.gmra.mxu0 %v227
    %v339 = vpop.f32.mrf.mxu0
    %v340 = vadd.f32 0.0, %v339
    %341 = vdwg.mxu0
    %v343 = vrot.slane %v271, 1
    %v344 = vrot.slane %v271, 2
    %v345 = vrot.slane %v271, 3
    %v346 = vrot.slane %v271, 4
    %v347 = vrot.slane %v271, 5
    %v348 = vrot.slane %v271, 6
    %v349 = vrot.slane %v271, 7
    %v350 = vperm.slane %v271, 0
    %v351 = vperm.slane %v343, 0
    %v352 = vperm.slane %v344, 0
    %v353 = vperm.slane %v345, 0
    %v354 = vperm.slane %v346, 0
    %v355 = vperm.slane %v347, 0
    %v356 = vperm.slane %v348, 0
    %v357 = vperm.slane %v349, 0
    %v366 = vmul.f32 %v350, %v247
    %v367 = vmul.f32 %v351, %v247
    %v368 = vmul.f32 %v352, %v247
    %v369 = vmul.f32 %v353, %v247
    %v370 = vmul.f32 %v354, %v247
    %v371 = vmul.f32 %v355, %v247
    %v372 = vmul.f32 %v356, %v247
    %v373 = vmul.f32 %v357, %v247
    %v375 = vrot.slane %v274, 1
    %v376 = vrot.slane %v274, 2
    %v377 = vrot.slane %v274, 3
    %v378 = vrot.slane %v274, 4
    %v379 = vrot.slane %v274, 5
    %v380 = vrot.slane %v274, 6
    %v381 = vrot.slane %v274, 7
    %v382 = vperm.slane %v274, 0
    %v383 = vperm.slane %v375, 0
    %v384 = vperm.slane %v376, 0
    %v385 = vperm.slane %v377, 0
    %v386 = vperm.slane %v378, 0
    %v387 = vperm.slane %v379, 0
    %v388 = vperm.slane %v380, 0
    %v389 = vperm.slane %v381, 0
    %v398 = vmul.f32 %v382, %v250
    %v399 = vmul.f32 %v383, %v250
    %v400 = vmul.f32 %v384, %v250
    %v401 = vmul.f32 %v385, %v250
    %v402 = vmul.f32 %v386, %v250
    %v403 = vmul.f32 %v387, %v250
    %v404 = vmul.f32 %v388, %v250
    %v405 = vmul.f32 %v389, %v250
    %v406 = vadd.f32 %v366, %v398
    %v407 = vadd.f32 %v367, %v399
    %v408 = vadd.f32 %v368, %v400
    %v409 = vadd.f32 %v369, %v401
    %v410 = vadd.f32 %v370, %v402
    %v411 = vadd.f32 %v371, %v403
    %v412 = vadd.f32 %v372, %v404
    %v413 = vadd.f32 %v373, %v405
    %v415 = vrot.slane %v277, 1
    %v416 = vrot.slane %v277, 2
    %v417 = vrot.slane %v277, 3
    %v418 = vrot.slane %v277, 4
    %v419 = vrot.slane %v277, 5
    %v420 = vrot.slane %v277, 6
    %v421 = vrot.slane %v277, 7
    %v422 = vperm.slane %v277, 0
    %v423 = vperm.slane %v415, 0
    %v424 = vperm.slane %v416, 0
    %v425 = vperm.slane %v417, 0
    %v426 = vperm.slane %v418, 0
    %v427 = vperm.slane %v419, 0
    %v428 = vperm.slane %v420, 0
    %v429 = vperm.slane %v421, 0
    %v438 = vmul.f32 %v422, %v253
    %v439 = vmul.f32 %v423, %v253
    %v440 = vmul.f32 %v424, %v253
    %v441 = vmul.f32 %v425, %v253
    %v442 = vmul.f32 %v426, %v253
    %v443 = vmul.f32 %v427, %v253
    %v444 = vmul.f32 %v428, %v253
    %v445 = vmul.f32 %v429, %v253
    %v446 = vadd.f32 %v406, %v438
    %v447 = vadd.f32 %v407, %v439
    %v448 = vadd.f32 %v408, %v440
    %v449 = vadd.f32 %v409, %v441
    %v450 = vadd.f32 %v410, %v442
    %v451 = vadd.f32 %v411, %v443
    %v452 = vadd.f32 %v412, %v444
    %v453 = vadd.f32 %v413, %v445
    %v455 = vrot.slane %v280, 1
    %v456 = vrot.slane %v280, 2
    %v457 = vrot.slane %v280, 3
    %v458 = vrot.slane %v280, 4
    %v459 = vrot.slane %v280, 5
    %v460 = vrot.slane %v280, 6
    %v461 = vrot.slane %v280, 7
    %v462 = vperm.slane %v280, 0
    %v463 = vperm.slane %v455, 0
    %v464 = vperm.slane %v456, 0
    %v465 = vperm.slane %v457, 0
    %v466 = vperm.slane %v458, 0
    %v467 = vperm.slane %v459, 0
    %v468 = vperm.slane %v460, 0
    %v469 = vperm.slane %v461, 0
    %v478 = vmul.f32 %v462, %v256
    %v479 = vmul.f32 %v463, %v256
    %v480 = vmul.f32 %v464, %v256
    %v481 = vmul.f32 %v465, %v256
    %v482 = vmul.f32 %v466, %v256
    %v483 = vmul.f32 %v467, %v256
    %v484 = vmul.f32 %v468, %v256
    %v485 = vmul.f32 %v469, %v256
    %v486 = vadd.f32 %v446, %v478
    %v487 = vadd.f32 %v447, %v479
    %v488 = vadd.f32 %v448, %v480
    %v489 = vadd.f32 %v449, %v481
    %v490 = vadd.f32 %v450, %v482
    %v491 = vadd.f32 %v451, %v483
    %v492 = vadd.f32 %v452, %v484
    %v493 = vadd.f32 %v453, %v485
    %v495 = vrot.slane %v283, 1
    %v496 = vrot.slane %v283, 2
    %v497 = vrot.slane %v283, 3
    %v498 = vrot.slane %v283, 4
    %v499 = vrot.slane %v283, 5
    %v500 = vrot.slane %v283, 6
    %v501 = vrot.slane %v283, 7
    %v502 = vperm.slane %v283, 0
    %v503 = vperm.slane %v495, 0
    %v504 = vperm.slane %v496, 0
    %v505 = vperm.slane %v497, 0
    %v506 = vperm.slane %v498, 0
    %v507 = vperm.slane %v499, 0
    %v508 = vperm.slane %v500, 0
    %v509 = vperm.slane %v501, 0
    %v518 = vmul.f32 %v502, %v259
    %v519 = vmul.f32 %v503, %v259
    %v520 = vmul.f32 %v504, %v259
    %v521 = vmul.f32 %v505, %v259
    %v522 = vmul.f32 %v506, %v259
    %v523 = vmul.f32 %v507, %v259
    %v524 = vmul.f32 %v508, %v259
    %v525 = vmul.f32 %v509, %v259
    %v527 = vrot.slane %v286, 1
    %v528 = vrot.slane %v286, 2
    %v529 = vrot.slane %v286, 3
    %v530 = vrot.slane %v286, 4
    %v531 = vrot.slane %v286, 5
    %v532 = vrot.slane %v286, 6
    %v533 = vrot.slane %v286, 7
    %v534 = vperm.slane %v286, 0
    %v535 = vperm.slane %v527, 0
    %v536 = vperm.slane %v528, 0
    %v537 = vperm.slane %v529, 0
    %v538 = vperm.slane %v530, 0
    %v539 = vperm.slane %v531, 0
    %v540 = vperm.slane %v532, 0
    %v541 = vperm.slane %v533, 0
    %v550 = vmul.f32 %v534, %v262
    %v551 = vmul.f32 %v535, %v262
    %v552 = vmul.f32 %v536, %v262
    %v553 = vmul.f32 %v537, %v262
    %v554 = vmul.f32 %v538, %v262
    %v555 = vmul.f32 %v539, %v262
    %v556 = vmul.f32 %v540, %v262
    %v557 = vmul.f32 %v541, %v262
    %v558 = vadd.f32 %v518, %v550
    %v559 = vadd.f32 %v519, %v551
    %v560 = vadd.f32 %v520, %v552
    %v561 = vadd.f32 %v521, %v553
    %v562 = vadd.f32 %v522, %v554
    %v563 = vadd.f32 %v523, %v555
    %v564 = vadd.f32 %v524, %v556
    %v565 = vadd.f32 %v525, %v557
    %v567 = vrot.slane %v289, 1
    %v568 = vrot.slane %v289, 2
    %v569 = vrot.slane %v289, 3
    %v570 = vrot.slane %v289, 4
    %v571 = vrot.slane %v289, 5
    %v572 = vrot.slane %v289, 6
    %v573 = vrot.slane %v289, 7
    %v574 = vperm.slane %v289, 0
    %v575 = vperm.slane %v567, 0
    %v576 = vperm.slane %v568, 0
    %v577 = vperm.slane %v569, 0
    %v578 = vperm.slane %v570, 0
    %v579 = vperm.slane %v571, 0
    %v580 = vperm.slane %v572, 0
    %v581 = vperm.slane %v573, 0
    %v590 = vmul.f32 %v574, %v265
    %v591 = vmul.f32 %v575, %v265
    %v592 = vmul.f32 %v576, %v265
    %v593 = vmul.f32 %v577, %v265
    %v594 = vmul.f32 %v578, %v265
    %v595 = vmul.f32 %v579, %v265
    %v596 = vmul.f32 %v580, %v265
    %v597 = vmul.f32 %v581, %v265
    %v598 = vadd.f32 %v558, %v590
    %v599 = vadd.f32 %v559, %v591
    %v600 = vadd.f32 %v560, %v592
    %v601 = vadd.f32 %v561, %v593
    %v602 = vadd.f32 %v562, %v594
    %v603 = vadd.f32 %v563, %v595
    %v604 = vadd.f32 %v564, %v596
    %v605 = vadd.f32 %v565, %v597
    %v607 = vrot.slane %v292, 1
    %v608 = vrot.slane %v292, 2
    %v609 = vrot.slane %v292, 3
    %v610 = vrot.slane %v292, 4
    %v611 = vrot.slane %v292, 5
    %v612 = vrot.slane %v292, 6
    %v613 = vrot.slane %v292, 7
    %v614 = vperm.slane %v292, 0
    %v615 = vperm.slane %v607, 0
    %v616 = vperm.slane %v608, 0
    %v617 = vperm.slane %v609, 0
    %v618 = vperm.slane %v610, 0
    %v619 = vperm.slane %v611, 0
    %v620 = vperm.slane %v612, 0
    %v621 = vperm.slane %v613, 0
    %v630 = vmul.f32 %v614, %v268
    %v631 = vmul.f32 %v615, %v268
    %v632 = vmul.f32 %v616, %v268
    %v633 = vmul.f32 %v617, %v268
    %v634 = vmul.f32 %v618, %v268
    %v635 = vmul.f32 %v619, %v268
    %v636 = vmul.f32 %v620, %v268
    %v637 = vmul.f32 %v621, %v268
    %v638 = vadd.f32 %v598, %v630
    %v639 = vadd.f32 %v599, %v631
    %v640 = vadd.f32 %v600, %v632
    %v641 = vadd.f32 %v601, %v633
    %v642 = vadd.f32 %v602, %v634
    %v643 = vadd.f32 %v603, %v635
    %v644 = vadd.f32 %v604, %v636
    %v645 = vadd.f32 %v605, %v637
    %v646 = vstv %s39
    %v647 = vmul.f32 %v486, %v646
    %v648 = vmul.f32 %v487, %v646
    %v649 = vmul.f32 %v488, %v646
    %v650 = vmul.f32 %v489, %v646
    %v651 = vmul.f32 %v490, %v646
    %v652 = vmul.f32 %v491, %v646
    %v653 = vmul.f32 %v492, %v646
    %v654 = vmul.f32 %v493, %v646
    %v655 = vstv %s41
    %v656 = vmul.f32 %v638, %v655
    %v657 = vmul.f32 %v639, %v655
    %v658 = vmul.f32 %v640, %v655
    %v659 = vmul.f32 %v641, %v655
    %v660 = vmul.f32 %v642, %v655
    %v661 = vmul.f32 %v643, %v655
    %v662 = vmul.f32 %v644, %v655
    %v663 = vmul.f32 %v645, %v655
    %v664 = vadd.f32 %v647, %v656
    %v665 = vadd.f32 %v648, %v657
    %v666 = vadd.f32 %v649, %v658
    %v667 = vadd.f32 %v650, %v659
    %v668 = vadd.f32 %v651, %v660
    %v669 = vadd.f32 %v652, %v661
    %v670 = vadd.f32 %v653, %v662
    %v671 = vadd.f32 %v654, %v663
    %v672 = vstv %s43
    %v673 = vadd.f32 %v664, %v672
    %v674 = vadd.f32 %v665, %v672
    %v675 = vadd.f32 %v666, %v672
    %v676 = vadd.f32 %v667, %v672
    %v677 = vadd.f32 %v668, %v672
    %v678 = vadd.f32 %v669, %v672
    %v679 = vadd.f32 %v670, %v672
    %v680 = vadd.f32 %v671, %v672
    %v681 = vstv %s40
    %v682 = vmul.f32 %v486, %v681
    %v683 = vmul.f32 %v487, %v681
    %v684 = vmul.f32 %v488, %v681
    %v685 = vmul.f32 %v489, %v681
    %v686 = vmul.f32 %v490, %v681
    %v687 = vmul.f32 %v491, %v681
    %v688 = vmul.f32 %v492, %v681
    %v689 = vmul.f32 %v493, %v681
    %v690 = vstv %s42
    %v691 = vmul.f32 %v638, %v690
    %v692 = vmul.f32 %v639, %v690
    %v693 = vmul.f32 %v640, %v690
    %v694 = vmul.f32 %v641, %v690
    %v695 = vmul.f32 %v642, %v690
    %v696 = vmul.f32 %v643, %v690
    %v697 = vmul.f32 %v644, %v690
    %v698 = vmul.f32 %v645, %v690
    %v699 = vadd.f32 %v682, %v691
    %v700 = vadd.f32 %v683, %v692
    %v701 = vadd.f32 %v684, %v693
    %v702 = vadd.f32 %v685, %v694
    %v703 = vadd.f32 %v686, %v695
    %v704 = vadd.f32 %v687, %v696
    %v705 = vadd.f32 %v688, %v697
    %v706 = vadd.f32 %v689, %v698
    %v707 = vstv %s44
    %v708 = vadd.f32 %v699, %v707
    %v709 = vadd.f32 %v700, %v707
    %v710 = vadd.f32 %v701, %v707
    %v711 = vadd.f32 %v702, %v707
    %v712 = vadd.f32 %v703, %v707
    %v713 = vadd.f32 %v704, %v707
    %v714 = vadd.f32 %v705, %v707
    %v715 = vadd.f32 %v706, %v707
    %v716 = vmax.f32 %v673, %v677
    %v717 = vmax.f32 %v674, %v678
    %v718 = vmax.f32 %v675, %v679
    %v719 = vmax.f32 %v676, %v680
    %v720 = vmax.f32 %v716, %v717
    %v721 = vmax.f32 %v718, %v719
    %v722 = vmax.f32 %v720, %v721
    %v723 = vsub.f32 %v673, %v722
    %v724 = vsub.f32 %v674, %v722
    %v725 = vsub.f32 %v675, %v722
    %v726 = vsub.f32 %v676, %v722
    %v727 = vsub.f32 %v677, %v722
    %v728 = vsub.f32 %v678, %v722
    %v729 = vsub.f32 %v679, %v722
    %v730 = vsub.f32 %v680, %v722
    %v731 = vmul.f32 %v723, 1.442695
    %v732 = vpow.pop %v731
    %v733 = vmul.f32 %v724, 1.442695
    %v734 = vpow.pop %v733
    %v735 = vmul.f32 %v725, 1.442695
    %v736 = vpow.pop %v735
    %v737 = vmul.f32 %v726, 1.442695
    %v738 = vpow.pop %v737
    %v739 = vmul.f32 %v727, 1.442695
    %v740 = vpow.pop %v739
    %v741 = vmul.f32 %v728, 1.442695
    %v742 = vpow.pop %v741
    %v743 = vmul.f32 %v729, 1.442695
    %v744 = vpow.pop %v743
    %v745 = vmul.f32 %v730, 1.442695
    %v746 = vpow.pop %v745
    %v747 = vadd.f32 %v732, %v734
    %v748 = vadd.f32 %v747, %v736
    %v749 = vadd.f32 %v748, %v738
    %v750 = vadd.f32 %v749, %v740
    %v751 = vadd.f32 %v750, %v742
    %v752 = vadd.f32 %v751, %v744
    %v753 = vadd.f32 %v752, %v746
    %v754 = vrcp.pop %v753
    %v755 = vmul.f32 %v732, %v754
    %v756 = vmul.f32 %v734, %v754
    %v757 = vmul.f32 %v736, %v754
    %v758 = vmul.f32 %v738, %v754
    %v759 = vmul.f32 %v740, %v754
    %v760 = vmul.f32 %v742, %v754
    %v761 = vmul.f32 %v744, %v754
    %v762 = vmul.f32 %v746, %v754
    %v763 = vmax.f32 %v708, %v712
    %v764 = vmax.f32 %v709, %v713
    %v765 = vmax.f32 %v710, %v714
    %v766 = vmax.f32 %v711, %v715
    %v767 = vmax.f32 %v763, %v764
    %v768 = vmax.f32 %v765, %v766
    %v769 = vmax.f32 %v767, %v768
    %v770 = vsub.f32 %v708, %v769
    %v771 = vsub.f32 %v709, %v769
    %v772 = vsub.f32 %v710, %v769
    %v773 = vsub.f32 %v711, %v769
    %v774 = vsub.f32 %v712, %v769
    %v775 = vsub.f32 %v713, %v769
    %v776 = vsub.f32 %v714, %v769
    %v777 = vsub.f32 %v715, %v769
    %v778 = vmul.f32 %v770, 1.442695
    %v779 = vpow.pop %v778
    %v780 = vmul.f32 %v771, 1.442695
    %v781 = vpow.pop %v780
    %v782 = vmul.f32 %v772, 1.442695
    %v783 = vpow.pop %v782
    %v784 = vmul.f32 %v773, 1.442695
    %v785 = vpow.pop %v784
    %v786 = vmul.f32 %v774, 1.442695
    %v787 = vpow.pop %v786
    %v788 = vmul.f32 %v775, 1.442695
    %v789 = vpow.pop %v788
    %v790 = vmul.f32 %v776, 1.442695
    %v791 = vpow.pop %v790
    %v792 = vmul.f32 %v777, 1.442695
    %v793 = vpow.pop %v792
    %v794 = vadd.f32 %v779, %v781
    %v795 = vadd.f32 %v794, %v783
    %v796 = vadd.f32 %v795, %v785
    %v797 = vadd.f32 %v796, %v787
    %v798 = vadd.f32 %v797, %v789
    %v799 = vadd.f32 %v798, %v791
    %v800 = vadd.f32 %v799, %v793
    %v801 = vrcp.pop %v800
    %v802 = vmul.f32 %v779, %v801
    %v803 = vmul.f32 %v781, %v801
    %v804 = vmul.f32 %v783, %v801
    %v805 = vmul.f32 %v785, %v801
    %v806 = vmul.f32 %v787, %v801
    %v807 = vmul.f32 %v789, %v801
    %v808 = vmul.f32 %v791, %v801
    %v809 = vmul.f32 %v793, %v801
    %v810 = vstv %s45
    %v811 = vmul.f32 %v755, %v810
    %v812 = vmul.f32 %v756, %v810
    %v813 = vmul.f32 %v757, %v810
    %v814 = vmul.f32 %v758, %v810
    %v815 = vmul.f32 %v759, %v810
    %v816 = vmul.f32 %v760, %v810
    %v817 = vmul.f32 %v761, %v810
    %v818 = vmul.f32 %v762, %v810
    %v819 = vstv %s47
    %v820 = vmul.f32 %v802, %v819
    %v821 = vmul.f32 %v803, %v819
    %v822 = vmul.f32 %v804, %v819
    %v823 = vmul.f32 %v805, %v819
    %v824 = vmul.f32 %v806, %v819
    %v825 = vmul.f32 %v807, %v819
    %v826 = vmul.f32 %v808, %v819
    %v827 = vmul.f32 %v809, %v819
    %v828 = vadd.f32 %v811, %v820
    %v829 = vadd.f32 %v812, %v821
    %v830 = vadd.f32 %v813, %v822
    %v831 = vadd.f32 %v814, %v823
    %v832 = vadd.f32 %v815, %v824
    %v833 = vadd.f32 %v816, %v825
    %v834 = vadd.f32 %v817, %v826
    %v835 = vadd.f32 %v818, %v827
    %v836 = vstv %s49
    %v837 = vadd.f32 %v828, %v836
    %v838 = vadd.f32 %v829, %v836
    %v839 = vadd.f32 %v830, %v836
    %v840 = vadd.f32 %v831, %v836
    %v841 = vadd.f32 %v832, %v836
    %v842 = vadd.f32 %v833, %v836
    %v843 = vadd.f32 %v834, %v836
    %v844 = vadd.f32 %v835, %v836
    %v845 = vstv %s46
    %v846 = vmul.f32 %v755, %v845
    %v847 = vmul.f32 %v756, %v845
    %v848 = vmul.f32 %v757, %v845
    %v849 = vmul.f32 %v758, %v845
    %v850 = vmul.f32 %v759, %v845
    %v851 = vmul.f32 %v760, %v845
    %v852 = vmul.f32 %v761, %v845
    %v853 = vmul.f32 %v762, %v845
    %v854 = vstv %s48
    %v855 = vmul.f32 %v802, %v854
    %v856 = vmul.f32 %v803, %v854
    %v857 = vmul.f32 %v804, %v854
    %v858 = vmul.f32 %v805, %v854
    %v859 = vmul.f32 %v806, %v854
    %v860 = vmul.f32 %v807, %v854
    %v861 = vmul.f32 %v808, %v854
    %v862 = vmul.f32 %v809, %v854
    %v863 = vadd.f32 %v846, %v855
    %v864 = vadd.f32 %v847, %v856
    %v865 = vadd.f32 %v848, %v857
    %v866 = vadd.f32 %v849, %v858
    %v867 = vadd.f32 %v850, %v859
    %v868 = vadd.f32 %v851, %v860
    %v869 = vadd.f32 %v852, %v861
    %v870 = vadd.f32 %v853, %v862
    %v871 = vstv %s50
    %v872 = vadd.f32 %v863, %v871
    %v873 = vadd.f32 %v864, %v871
    %v874 = vadd.f32 %v865, %v871
    %v875 = vadd.f32 %v866, %v871
    %v876 = vadd.f32 %v867, %v871
    %v877 = vadd.f32 %v868, %v871
    %v878 = vadd.f32 %v869, %v871
    %v879 = vadd.f32 %v870, %v871
    %v880 = vperm.slane %v295, 0
    %v881 = vperm.slane %v298, 0
    %v882 = vperm.slane %v301, 0
    %v883 = vperm.slane %v304, 0
    %v884 = vperm.slane %v307, 0
    %v885 = vperm.slane %v310, 0
    %v886 = vperm.slane %v313, 0
    %v887 = vperm.slane %v316, 0
    %v888 = vmul.f32 %v837, %v880
    %v889 = vmul.f32 %v837, %v881
    %v890 = vmul.f32 %v837, %v882
    %v891 = vmul.f32 %v837, %v883
    %v892 = vmul.f32 %v837, %v884
    %v893 = vmul.f32 %v837, %v885
    %v894 = vmul.f32 %v837, %v886
    %v895 = vmul.f32 %v837, %v887
    %v896 = vperm.slane %v295, 1
    %v897 = vperm.slane %v298, 1
    %v898 = vperm.slane %v301, 1
    %v899 = vperm.slane %v304, 1
    %v900 = vperm.slane %v307, 1
    %v901 = vperm.slane %v310, 1
    %v902 = vperm.slane %v313, 1
    %v903 = vperm.slane %v316, 1
    %v904 = vmul.f32 %v838, %v896
    %v905 = vmul.f32 %v838, %v897
    %v906 = vmul.f32 %v838, %v898
    %v907 = vmul.f32 %v838, %v899
    %v908 = vmul.f32 %v838, %v900
    %v909 = vmul.f32 %v838, %v901
    %v910 = vmul.f32 %v838, %v902
    %v911 = vmul.f32 %v838, %v903
    %v912 = vadd.f32 %v888, %v904
    %v913 = vadd.f32 %v889, %v905
    %v914 = vadd.f32 %v890, %v906
    %v915 = vadd.f32 %v891, %v907
    %v916 = vadd.f32 %v892, %v908
    %v917 = vadd.f32 %v893, %v909
    %v918 = vadd.f32 %v894, %v910
    %v919 = vadd.f32 %v895, %v911
    %v920 = vperm.slane %v295, 2
    %v921 = vperm.slane %v298, 2
    %v922 = vperm.slane %v301, 2
    %v923 = vperm.slane %v304, 2
    %v924 = vperm.slane %v307, 2
    %v925 = vperm.slane %v310, 2
    %v926 = vperm.slane %v313, 2
    %v927 = vperm.slane %v316, 2
    %v928 = vmul.f32 %v839, %v920
    %v929 = vmul.f32 %v839, %v921
    %v930 = vmul.f32 %v839, %v922
    %v931 = vmul.f32 %v839, %v923
    %v932 = vmul.f32 %v839, %v924
    %v933 = vmul.f32 %v839, %v925
    %v934 = vmul.f32 %v839, %v926
    %v935 = vmul.f32 %v839, %v927
    %v936 = vadd.f32 %v912, %v928
    %v937 = vadd.f32 %v913, %v929
    %v938 = vadd.f32 %v914, %v930
    %v939 = vadd.f32 %v915, %v931
    %v940 = vadd.f32 %v916, %v932
    %v941 = vadd.f32 %v917, %v933
    %v942 = vadd.f32 %v918, %v934
    %v943 = vadd.f32 %v919, %v935
    %v944 = vperm.slane %v295, 3
    %v945 = vperm.slane %v298, 3
    %v946 = vperm.slane %v301, 3
    %v947 = vperm.slane %v304, 3
    %v948 = vperm.slane %v307, 3
    %v949 = vperm.slane %v310, 3
    %v950 = vperm.slane %v313, 3
    %v951 = vperm.slane %v316, 3
    %v952 = vmul.f32 %v840, %v944
    %v953 = vmul.f32 %v840, %v945
    %v954 = vmul.f32 %v840, %v946
    %v955 = vmul.f32 %v840, %v947
    %v956 = vmul.f32 %v840, %v948
    %v957 = vmul.f32 %v840, %v949
    %v958 = vmul.f32 %v840, %v950
    %v959 = vmul.f32 %v840, %v951
    %v960 = vadd.f32 %v936, %v952
    %v961 = vadd.f32 %v937, %v953
    %v962 = vadd.f32 %v938, %v954
    %v963 = vadd.f32 %v939, %v955
    %v964 = vadd.f32 %v940, %v956
    %v965 = vadd.f32 %v941, %v957
    %v966 = vadd.f32 %v942, %v958
    %v967 = vadd.f32 %v943, %v959
    %v968 = vperm.slane %v295, 4
    %v969 = vperm.slane %v298, 4
    %v970 = vperm.slane %v301, 4
    %v971 = vperm.slane %v304, 4
    %v972 = vperm.slane %v307, 4
    %v973 = vperm.slane %v310, 4
    %v974 = vperm.slane %v313, 4
    %v975 = vperm.slane %v316, 4
    %v976 = vmul.f32 %v841, %v968
    %v977 = vmul.f32 %v841, %v969
    %v978 = vmul.f32 %v841, %v970
    %v979 = vmul.f32 %v841, %v971
    %v980 = vmul.f32 %v841, %v972
    %v981 = vmul.f32 %v841, %v973
    %v982 = vmul.f32 %v841, %v974
    %v983 = vmul.f32 %v841, %v975
    %v984 = vadd.f32 %v960, %v976
    %v985 = vadd.f32 %v961, %v977
    %v986 = vadd.f32 %v962, %v978
    %v987 = vadd.f32 %v963, %v979
    %v988 = vadd.f32 %v964, %v980
    %v989 = vadd.f32 %v965, %v981
    %v990 = vadd.f32 %v966, %v982
    %v991 = vadd.f32 %v967, %v983
    %v992 = vperm.slane %v295, 5
    %v993 = vperm.slane %v298, 5
    %v994 = vperm.slane %v301, 5
    %v995 = vperm.slane %v304, 5
    %v996 = vperm.slane %v307, 5
    %v997 = vperm.slane %v310, 5
    %v998 = vperm.slane %v313, 5
    %v999 = vperm.slane %v316, 5
    %v1000 = vmul.f32 %v842, %v992
    %v1001 = vmul.f32 %v842, %v993
    %v1002 = vmul.f32 %v842, %v994
    %v1003 = vmul.f32 %v842, %v995
    %v1004 = vmul.f32 %v842, %v996
    %v1005 = vmul.f32 %v842, %v997
    %v1006 = vmul.f32 %v842, %v998
    %v1007 = vmul.f32 %v842, %v999
    %v1008 = vadd.f32 %v984, %v1000
    %v1009 = vadd.f32 %v985, %v1001
    %v1010 = vadd.f32 %v986, %v1002
    %v1011 = vadd.f32 %v987, %v1003
    %v1012 = vadd.f32 %v988, %v1004
    %v1013 = vadd.f32 %v989, %v1005
    %v1014 = vadd.f32 %v990, %v1006
    %v1015 = vadd.f32 %v991, %v1007
    %v1016 = vperm.slane %v295, 6
    %v1017 = vperm.slane %v298, 6
    %v1018 = vperm.slane %v301, 6
    %v1019 = vperm.slane %v304, 6
    %v1020 = vperm.slane %v307, 6
    %v1021 = vperm.slane %v310, 6
    %v1022 = vperm.slane %v313, 6
    %v1023 = vperm.slane %v316, 6
    %v1024 = vmul.f32 %v843, %v1016
    %v1025 = vmul.f32 %v843, %v1017
    %v1026 = vmul.f32 %v843, %v1018
    %v1027 = vmul.f32 %v843, %v1019
    %v1028 = vmul.f32 %v843, %v1020
    %v1029 = vmul.f32 %v843, %v1021
    %v1030 = vmul.f32 %v843, %v1022
    %v1031 = vmul.f32 %v843, %v1023
    %v1032 = vadd.f32 %v1008, %v1024
    %v1033 = vadd.f32 %v1009, %v1025
    %v1034 = vadd.f32 %v1010, %v1026
    %v1035 = vadd.f32 %v1011, %v1027
    %v1036 = vadd.f32 %v1012, %v1028
    %v1037 = vadd.f32 %v1013, %v1029
    %v1038 = vadd.f32 %v1014, %v1030
    %v1039 = vadd.f32 %v1015, %v1031
    %v1040 = vperm.slane %v295, 7
    %v1041 = vperm.slane %v298, 7
    %v1042 = vperm.slane %v301, 7
    %v1043 = vperm.slane %v304, 7
    %v1044 = vperm.slane %v307, 7
    %v1045 = vperm.slane %v310, 7
    %v1046 = vperm.slane %v313, 7
    %v1047 = vperm.slane %v316, 7
    %v1048 = vmul.f32 %v844, %v1040
    %v1049 = vmul.f32 %v844, %v1041
    %v1050 = vmul.f32 %v844, %v1042
    %v1051 = vmul.f32 %v844, %v1043
    %v1052 = vmul.f32 %v844, %v1044
    %v1053 = vmul.f32 %v844, %v1045
    %v1054 = vmul.f32 %v844, %v1046
    %v1055 = vmul.f32 %v844, %v1047
    %v1056 = vadd.f32 %v1032, %v1048
    %v1057 = vadd.f32 %v1033, %v1049
    %v1058 = vadd.f32 %v1034, %v1050
    %v1059 = vadd.f32 %v1035, %v1051
    %v1060 = vadd.f32 %v1036, %v1052
    %v1061 = vadd.f32 %v1037, %v1053
    %v1062 = vadd.f32 %v1038, %v1054
    %v1063 = vadd.f32 %v1039, %v1055
    %v1064 = vperm.slane %v319, 0
    %v1065 = vperm.slane %v322, 0
    %v1066 = vperm.slane %v325, 0
    %v1067 = vperm.slane %v328, 0
    %v1068 = vperm.slane %v331, 0
    %v1069 = vperm.slane %v334, 0
    %v1070 = vperm.slane %v337, 0
    %v1071 = vperm.slane %v340, 0
    %v1072 = vmul.f32 %v872, %v1064
    %v1073 = vmul.f32 %v872, %v1065
    %v1074 = vmul.f32 %v872, %v1066
    %v1075 = vmul.f32 %v872, %v1067
    %v1076 = vmul.f32 %v872, %v1068
    %v1077 = vmul.f32 %v872, %v1069
    %v1078 = vmul.f32 %v872, %v1070
    %v1079 = vmul.f32 %v872, %v1071
    %v1080 = vperm.slane %v319, 1
    %v1081 = vperm.slane %v322, 1
    %v1082 = vperm.slane %v325, 1
    %v1083 = vperm.slane %v328, 1
    %v1084 = vperm.slane %v331, 1
    %v1085 = vperm.slane %v334, 1
    %v1086 = vperm.slane %v337, 1
    %v1087 = vperm.slane %v340, 1
    %v1088 = vmul.f32 %v873, %v1080
    %v1089 = vmul.f32 %v873, %v1081
    %v1090 = vmul.f32 %v873, %v1082
    %v1091 = vmul.f32 %v873, %v1083
    %v1092 = vmul.f32 %v873, %v1084
    %v1093 = vmul.f32 %v873, %v1085
    %v1094 = vmul.f32 %v873, %v1086
    %v1095 = vmul.f32 %v873, %v1087
    %v1096 = vadd.f32 %v1072, %v1088
    %v1097 = vadd.f32 %v1073, %v1089
    %v1098 = vadd.f32 %v1074, %v1090
    %v1099 = vadd.f32 %v1075, %v1091
    %v1100 = vadd.f32 %v1076, %v1092
    %v1101 = vadd.f32 %v1077, %v1093
    %v1102 = vadd.f32 %v1078, %v1094
    %v1103 = vadd.f32 %v1079, %v1095
    %v1104 = vperm.slane %v319, 2
    %v1105 = vperm.slane %v322, 2
    %v1106 = vperm.slane %v325, 2
    %v1107 = vperm.slane %v328, 2
    %v1108 = vperm.slane %v331, 2
    %v1109 = vperm.slane %v334, 2
    %v1110 = vperm.slane %v337, 2
    %v1111 = vperm.slane %v340, 2
    %v1112 = vmul.f32 %v874, %v1104
    %v1113 = vmul.f32 %v874, %v1105
    %v1114 = vmul.f32 %v874, %v1106
    %v1115 = vmul.f32 %v874, %v1107
    %v1116 = vmul.f32 %v874, %v1108
    %v1117 = vmul.f32 %v874, %v1109
    %v1118 = vmul.f32 %v874, %v1110
    %v1119 = vmul.f32 %v874, %v1111
    %v1120 = vadd.f32 %v1096, %v1112
    %v1121 = vadd.f32 %v1097, %v1113
    %v1122 = vadd.f32 %v1098, %v1114
    %v1123 = vadd.f32 %v1099, %v1115
    %v1124 = vadd.f32 %v1100, %v1116
    %v1125 = vadd.f32 %v1101, %v1117
    %v1126 = vadd.f32 %v1102, %v1118
    %v1127 = vadd.f32 %v1103, %v1119
    %v1128 = vperm.slane %v319, 3
    %v1129 = vperm.slane %v322, 3
    %v1130 = vperm.slane %v325, 3
    %v1131 = vperm.slane %v328, 3
    %v1132 = vperm.slane %v331, 3
    %v1133 = vperm.slane %v334, 3
    %v1134 = vperm.slane %v337, 3
    %v1135 = vperm.slane %v340, 3
    %v1136 = vmul.f32 %v875, %v1128
    %v1137 = vmul.f32 %v875, %v1129
    %v1138 = vmul.f32 %v875, %v1130
    %v1139 = vmul.f32 %v875, %v1131
    %v1140 = vmul.f32 %v875, %v1132
    %v1141 = vmul.f32 %v875, %v1133
    %v1142 = vmul.f32 %v875, %v1134
    %v1143 = vmul.f32 %v875, %v1135
    %v1144 = vadd.f32 %v1120, %v1136
    %v1145 = vadd.f32 %v1121, %v1137
    %v1146 = vadd.f32 %v1122, %v1138
    %v1147 = vadd.f32 %v1123, %v1139
    %v1148 = vadd.f32 %v1124, %v1140
    %v1149 = vadd.f32 %v1125, %v1141
    %v1150 = vadd.f32 %v1126, %v1142
    %v1151 = vadd.f32 %v1127, %v1143
    %v1152 = vperm.slane %v319, 4
    %v1153 = vperm.slane %v322, 4
    %v1154 = vperm.slane %v325, 4
    %v1155 = vperm.slane %v328, 4
    %v1156 = vperm.slane %v331, 4
    %v1157 = vperm.slane %v334, 4
    %v1158 = vperm.slane %v337, 4
    %v1159 = vperm.slane %v340, 4
    %v1160 = vmul.f32 %v876, %v1152
    %v1161 = vmul.f32 %v876, %v1153
    %v1162 = vmul.f32 %v876, %v1154
    %v1163 = vmul.f32 %v876, %v1155
    %v1164 = vmul.f32 %v876, %v1156
    %v1165 = vmul.f32 %v876, %v1157
    %v1166 = vmul.f32 %v876, %v1158
    %v1167 = vmul.f32 %v876, %v1159
    %v1168 = vadd.f32 %v1144, %v1160
    %v1169 = vadd.f32 %v1145, %v1161
    %v1170 = vadd.f32 %v1146, %v1162
    %v1171 = vadd.f32 %v1147, %v1163
    %v1172 = vadd.f32 %v1148, %v1164
    %v1173 = vadd.f32 %v1149, %v1165
    %v1174 = vadd.f32 %v1150, %v1166
    %v1175 = vadd.f32 %v1151, %v1167
    %v1176 = vperm.slane %v319, 5
    %v1177 = vperm.slane %v322, 5
    %v1178 = vperm.slane %v325, 5
    %v1179 = vperm.slane %v328, 5
    %v1180 = vperm.slane %v331, 5
    %v1181 = vperm.slane %v334, 5
    %v1182 = vperm.slane %v337, 5
    %v1183 = vperm.slane %v340, 5
    %v1184 = vmul.f32 %v877, %v1176
    %v1185 = vmul.f32 %v877, %v1177
    %v1186 = vmul.f32 %v877, %v1178
    %v1187 = vmul.f32 %v877, %v1179
    %v1188 = vmul.f32 %v877, %v1180
    %v1189 = vmul.f32 %v877, %v1181
    %v1190 = vmul.f32 %v877, %v1182
    %v1191 = vmul.f32 %v877, %v1183
    %v1192 = vadd.f32 %v1168, %v1184
    %v1193 = vadd.f32 %v1169, %v1185
    %v1194 = vadd.f32 %v1170, %v1186
    %v1195 = vadd.f32 %v1171, %v1187
    %v1196 = vadd.f32 %v1172, %v1188
    %v1197 = vadd.f32 %v1173, %v1189
    %v1198 = vadd.f32 %v1174, %v1190
    %v1199 = vadd.f32 %v1175, %v1191
    %v1200 = vperm.slane %v319, 6
    %v1201 = vperm.slane %v322, 6
    %v1202 = vperm.slane %v325, 6
    %v1203 = vperm.slane %v328, 6
    %v1204 = vperm.slane %v331, 6
    %v1205 = vperm.slane %v334, 6
    %v1206 = vperm.slane %v337, 6
    %v1207 = vperm.slane %v340, 6
    %v1208 = vmul.f32 %v878, %v1200
    %v1209 = vmul.f32 %v878, %v1201
    %v1210 = vmul.f32 %v878, %v1202
    %v1211 = vmul.f32 %v878, %v1203
    %v1212 = vmul.f32 %v878, %v1204
    %v1213 = vmul.f32 %v878, %v1205
    %v1214 = vmul.f32 %v878, %v1206
    %v1215 = vmul.f32 %v878, %v1207
    %v1216 = vadd.f32 %v1192, %v1208
    %v1217 = vadd.f32 %v1193, %v1209
    %v1218 = vadd.f32 %v1194, %v1210
    %v1219 = vadd.f32 %v1195, %v1211
    %v1220 = vadd.f32 %v1196, %v1212
    %v1221 = vadd.f32 %v1197, %v1213
    %v1222 = vadd.f32 %v1198, %v1214
    %v1223 = vadd.f32 %v1199, %v1215
    %v1224 = vperm.slane %v319, 7
    %v1225 = vperm.slane %v322, 7
    %v1226 = vperm.slane %v325, 7
    %v1227 = vperm.slane %v328, 7
    %v1228 = vperm.slane %v331, 7
    %v1229 = vperm.slane %v334, 7
    %v1230 = vperm.slane %v337, 7
    %v1231 = vperm.slane %v340, 7
    %v1232 = vmul.f32 %v879, %v1224
    %v1233 = vmul.f32 %v879, %v1225
    %v1234 = vmul.f32 %v879, %v1226
    %v1235 = vmul.f32 %v879, %v1227
    %v1236 = vmul.f32 %v879, %v1228
    %v1237 = vmul.f32 %v879, %v1229
    %v1238 = vmul.f32 %v879, %v1230
    %v1239 = vmul.f32 %v879, %v1231
    %v1240 = vadd.f32 %v1216, %v1232
    %v1241 = vadd.f32 %v1217, %v1233
    %v1242 = vadd.f32 %v1218, %v1234
    %v1243 = vadd.f32 %v1219, %v1235
    %v1244 = vadd.f32 %v1220, %v1236
    %v1245 = vadd.f32 %v1221, %v1237
    %v1246 = vadd.f32 %v1222, %v1238
    %v1247 = vadd.f32 %v1223, %v1239
    %v1248 = vadd.f32 %v1056, %v1057
    %v1249 = vadd.f32 %v1248, %v1058
    %v1250 = vadd.f32 %v1249, %v1059
    %v1251 = vadd.f32 %v1250, %v1060
    %v1252 = vadd.f32 %v1251, %v1061
    %v1253 = vadd.f32 %v1252, %v1062
    %v1254 = vadd.f32 %v1253, %v1063
    %v1255 = vadd.f32 %v1254, %v1240
    %v1256 = vadd.f32 %v1255, %v1241
    %v1257 = vadd.f32 %v1256, %v1242
    %v1258 = vadd.f32 %v1257, %v1243
    %v1259 = vadd.f32 %v1258, %v1244
    %v1260 = vadd.f32 %v1259, %v1245
    %v1261 = vadd.f32 %v1260, %v1246
    %v1262 = vadd.f32 %v1261, %v1247
    %v1263 = vrcp.pop 16.0
    %v1264 = vmul.f32 16.0, %v1263
    %v1265 = vsub.f32 1.0, %v1264
    %v1266 = vmul.f32 %v1263, %v1265
    %v1267 = vadd.f32 %v1263, %v1266
    %vm1268 = vweird.f32 %v1263
    %v1269 = vsel %vm1268, %v1263, %v1267
    %v1270 = vmul.f32 %v1262, %v1269
    %v1271 = vsub.f32 %v1056, %v1270
    %v1272 = vsub.f32 %v1057, %v1270
    %v1273 = vsub.f32 %v1058, %v1270
    %v1274 = vsub.f32 %v1059, %v1270
    %v1275 = vsub.f32 %v1060, %v1270
    %v1276 = vsub.f32 %v1061, %v1270
    %v1277 = vsub.f32 %v1062, %v1270
    %v1278 = vsub.f32 %v1063, %v1270
    %v1279 = vsub.f32 %v1240, %v1270
    %v1280 = vsub.f32 %v1241, %v1270
    %v1281 = vsub.f32 %v1242, %v1270
    %v1282 = vsub.f32 %v1243, %v1270
    %v1283 = vsub.f32 %v1244, %v1270
    %v1284 = vsub.f32 %v1245, %v1270
    %v1285 = vsub.f32 %v1246, %v1270
    %v1286 = vsub.f32 %v1247, %v1270
    %v1287 = vmul.f32 %v1271, %v1271
    %v1288 = vmul.f32 %v1272, %v1272
    %v1289 = vmul.f32 %v1273, %v1273
    %v1290 = vmul.f32 %v1274, %v1274
    %v1291 = vmul.f32 %v1275, %v1275
    %v1292 = vmul.f32 %v1276, %v1276
    %v1293 = vmul.f32 %v1277, %v1277
    %v1294 = vmul.f32 %v1278, %v1278
    %v1295 = vmul.f32 %v1279, %v1279
    %v1296 = vmul.f32 %v1280, %v1280
    %v1297 = vmul.f32 %v1281, %v1281
    %v1298 = vmul.f32 %v1282, %v1282
    %v1299 = vmul.f32 %v1283, %v1283
    %v1300 = vmul.f32 %v1284, %v1284
    %v1301 = vmul.f32 %v1285, %v1285
    %v1302 = vmul.f32 %v1286, %v1286
    %v1303 = vadd.f32 %v1287, %v1288
    %v1304 = vadd.f32 %v1303, %v1289
    %v1305 = vadd.f32 %v1304, %v1290
    %v1306 = vadd.f32 %v1305, %v1291
    %v1307 = vadd.f32 %v1306, %v1292
    %v1308 = vadd.f32 %v1307, %v1293
    %v1309 = vadd.f32 %v1308, %v1294
    %v1310 = vadd.f32 %v1309, %v1295
    %v1311 = vadd.f32 %v1310, %v1296
    %v1312 = vadd.f32 %v1311, %v1297
    %v1313 = vadd.f32 %v1312, %v1298
    %v1314 = vadd.f32 %v1313, %v1299
    %v1315 = vadd.f32 %v1314, %v1300
    %v1316 = vadd.f32 %v1315, %v1301
    %v1317 = vadd.f32 %v1316, %v1302
    %v1318 = vmul.f32 %v1317, %v1269
    %v1319 = vadd.f32 %v1318, 1e-05
    %v1320 = vrsqrt.pop %v1319
    %v1321 = vmul.f32 %v1320, %v1319
    %v1322 = vmul.f32 %v1321, %v1320
    %v1323 = vmul.f32 0.5, %v1322
    %v1324 = vsub.f32 1.5, %v1323
    %v1325 = vmul.f32 %v1320, %v1324
    %vm1326 = vweird.f32 %v1319
    %vm1327 = vweird.f32 %v1320
    %vm1328 = vmor %vm1326, %vm1327
    %v1329 = vsel %vm1328, %v1320, %v1325
    %v1330 = vmul.f32 %v1271, %v1329
    %v1331 = vmul.f32 %v1272, %v1329
    %v1332 = vmul.f32 %v1273, %v1329
    %v1333 = vmul.f32 %v1274, %v1329
    %v1334 = vmul.f32 %v1275, %v1329
    %v1335 = vmul.f32 %v1276, %v1329
    %v1336 = vmul.f32 %v1277, %v1329
    %v1337 = vmul.f32 %v1278, %v1329
    %v1338 = vmul.f32 %v1279, %v1329
    %v1339 = vmul.f32 %v1280, %v1329
    %v1340 = vmul.f32 %v1281, %v1329
    %v1341 = vmul.f32 %v1282, %v1329
    %v1342 = vmul.f32 %v1283, %v1329
    %v1343 = vmul.f32 %v1284, %v1329
    %v1344 = vmul.f32 %v1285, %v1329
    %v1345 = vmul.f32 %v1286, %v1329
    %1347 = vset.pattern.permute.xlu0 0
    %1348 = vperm.xlu0 %1347, %v51
    %v1349 = vpop.permute.xlu0 %1348
    %1352 = vset.pattern.permute.xlu0 0
    %1353 = vperm.xlu0 %1352, %v52
    %v1354 = vpop.permute.xlu0 %1353
    %1357 = vset.pattern.permute.xlu0 0
    %1358 = vperm.xlu0 %1357, %v53
    %v1359 = vpop.permute.xlu0 %1358
    %1362 = vset.pattern.permute.xlu0 0
    %1363 = vperm.xlu0 %1362, %v54
    %v1364 = vpop.permute.xlu0 %1363
    %1367 = vset.pattern.permute.xlu0 0
    %1368 = vperm.xlu0 %1367, %v55
    %v1369 = vpop.permute.xlu0 %1368
    %1372 = vset.pattern.permute.xlu0 0
    %1373 = vperm.xlu0 %1372, %v56
    %v1374 = vpop.permute.xlu0 %1373
    %1377 = vset.pattern.permute.xlu0 0
    %1378 = vperm.xlu0 %1377, %v57
    %v1379 = vpop.permute.xlu0 %1378
    %1382 = vset.pattern.permute.xlu0 0
    %1383 = vperm.xlu0 %1382, %v58
    %v1384 = vpop.permute.xlu0 %1383
    %1387 = vset.pattern.permute.xlu0 0
    %1388 = vperm.xlu0 %1387, %v59
    %v1389 = vpop.permute.xlu0 %1388
    %1392 = vset.pattern.permute.xlu0 0
    %1393 = vperm.xlu0 %1392, %v60
    %v1394 = vpop.permute.xlu0 %1393
    %1397 = vset.pattern.permute.xlu0 0
    %1398 = vperm.xlu0 %1397, %v61
    %v1399 = vpop.permute.xlu0 %1398
    %1402 = vset.pattern.permute.xlu0 0
    %1403 = vperm.xlu0 %1402, %v62
    %v1404 = vpop.permute.xlu0 %1403
    %1407 = vset.pattern.permute.xlu0 0
    %1408 = vperm.xlu0 %1407, %v63
    %v1409 = vpop.permute.xlu0 %1408
    %1412 = vset.pattern.permute.xlu0 0
    %1413 = vperm.xlu0 %1412, %v64
    %v1414 = vpop.permute.xlu0 %1413
    %1417 = vset.pattern.permute.xlu0 0
    %1418 = vperm.xlu0 %1417, %v65
    %v1419 = vpop.permute.xlu0 %1418
    %1422 = vset.pattern.permute.xlu0 0
    %1423 = vperm.xlu0 %1422, %v66
    %v1424 = vpop.permute.xlu0 %1423
    %v1426 = vmul.f32 %v1330, %v1349
    %v1427 = vmul.f32 %v1331, %v1354
    %v1428 = vmul.f32 %v1332, %v1359
    %v1429 = vmul.f32 %v1333, %v1364
    %v1430 = vmul.f32 %v1334, %v1369
    %v1431 = vmul.f32 %v1335, %v1374
    %v1432 = vmul.f32 %v1336, %v1379
    %v1433 = vmul.f32 %v1337, %v1384
    %v1434 = vmul.f32 %v1338, %v1389
    %v1435 = vmul.f32 %v1339, %v1394
    %v1436 = vmul.f32 %v1340, %v1399
    %v1437 = vmul.f32 %v1341, %v1404
    %v1438 = vmul.f32 %v1342, %v1409
    %v1439 = vmul.f32 %v1343, %v1414
    %v1440 = vmul.f32 %v1344, %v1419
    %v1441 = vmul.f32 %v1345, %v1424
    %1443 = vset.pattern.permute.xlu0 0
    %1444 = vperm.xlu0 %1443, %v67
    %v1445 = vpop.permute.xlu0 %1444
    %1448 = vset.pattern.permute.xlu0 0
    %1449 = vperm.xlu0 %1448, %v68
    %v1450 = vpop.permute.xlu0 %1449
    %1453 = vset.pattern.permute.xlu0 0
    %1454 = vperm.xlu0 %1453, %v69
    %v1455 = vpop.permute.xlu0 %1454
    %1458 = vset.pattern.permute.xlu0 0
    %1459 = vperm.xlu0 %1458, %v70
    %v1460 = vpop.permute.xlu0 %1459
    %1463 = vset.pattern.permute.xlu0 0
    %1464 = vperm.xlu0 %1463, %v71
    %v1465 = vpop.permute.xlu0 %1464
    %1468 = vset.pattern.permute.xlu0 0
    %1469 = vperm.xlu0 %1468, %v72
    %v1470 = vpop.permute.xlu0 %1469
    %1473 = vset.pattern.permute.xlu0 0
    %1474 = vperm.xlu0 %1473, %v73
    %v1475 = vpop.permute.xlu0 %1474
    %1478 = vset.pattern.permute.xlu0 0
    %1479 = vperm.xlu0 %1478, %v74
    %v1480 = vpop.permute.xlu0 %1479
    %1483 = vset.pattern.permute.xlu0 0
    %1484 = vperm.xlu0 %1483, %v75
    %v1485 = vpop.permute.xlu0 %1484
    %1488 = vset.pattern.permute.xlu0 0
    %1489 = vperm.xlu0 %1488, %v76
    %v1490 = vpop.permute.xlu0 %1489
    %1493 = vset.pattern.permute.xlu0 0
    %1494 = vperm.xlu0 %1493, %v77
    %v1495 = vpop.permute.xlu0 %1494
    %1498 = vset.pattern.permute.xlu0 0
    %1499 = vperm.xlu0 %1498, %v78
    %v1500 = vpop.permute.xlu0 %1499
    %1503 = vset.pattern.permute.xlu0 0
    %1504 = vperm.xlu0 %1503, %v79
    %v1505 = vpop.permute.xlu0 %1504
    %1508 = vset.pattern.permute.xlu0 0
    %1509 = vperm.xlu0 %1508, %v80
    %v1510 = vpop.permute.xlu0 %1509
    %1513 = vset.pattern.permute.xlu0 0
    %1514 = vperm.xlu0 %1513, %v81
    %v1515 = vpop.permute.xlu0 %1514
    %1518 = vset.pattern.permute.xlu0 0
    %1519 = vperm.xlu0 %1518, %v82
    %v1520 = vpop.permute.xlu0 %1519
    %v1522 = vadd.f32 %v1426, %v1445
    %v1523 = vadd.f32 %v1427, %v1450
    %v1524 = vadd.f32 %v1428, %v1455
    %v1525 = vadd.f32 %v1429, %v1460
    %v1526 = vadd.f32 %v1430, %v1465
    %v1527 = vadd.f32 %v1431, %v1470
    %v1528 = vadd.f32 %v1432, %v1475
    %v1529 = vadd.f32 %v1433, %v1480
    %v1530 = vadd.f32 %v1434, %v1485
    %v1531 = vadd.f32 %v1435, %v1490
    %v1532 = vadd.f32 %v1436, %v1495
    %v1533 = vadd.f32 %v1437, %v1500
    %v1534 = vadd.f32 %v1438, %v1505
    %v1535 = vadd.f32 %v1439, %v1510
    %v1536 = vadd.f32 %v1440, %v1515
    %v1537 = vadd.f32 %v1441, %v1520
    %v1538 = vxor.u32 %v1522, 2147483648
    %v1539 = vxor.u32 %v1523, 2147483648
    %v1540 = vxor.u32 %v1524, 2147483648
    %v1541 = vxor.u32 %v1525, 2147483648
    %v1542 = vxor.u32 %v1526, 2147483648
    %v1543 = vxor.u32 %v1527, 2147483648
    %v1544 = vxor.u32 %v1528, 2147483648
    %v1545 = vxor.u32 %v1529, 2147483648
    %v1546 = vxor.u32 %v1530, 2147483648
    %v1547 = vxor.u32 %v1531, 2147483648
    %v1548 = vxor.u32 %v1532, 2147483648
    %v1549 = vxor.u32 %v1533, 2147483648
    %v1550 = vxor.u32 %v1534, 2147483648
    %v1551 = vxor.u32 %v1535, 2147483648
    %v1552 = vxor.u32 %v1536, 2147483648
    %v1553 = vxor.u32 %v1537, 2147483648
    %v1554 = vmul.f32 %v1538, 1.442695
    %v1555 = vpow.pop %v1554
    %v1556 = vmul.f32 %v1539, 1.442695
    %v1557 = vpow.pop %v1556
    %v1558 = vmul.f32 %v1540, 1.442695
    %v1559 = vpow.pop %v1558
    %v1560 = vmul.f32 %v1541, 1.442695
    %v1561 = vpow.pop %v1560
    %v1562 = vmul.f32 %v1542, 1.442695
    %v1563 = vpow.pop %v1562
    %v1564 = vmul.f32 %v1543, 1.442695
    %v1565 = vpow.pop %v1564
    %v1566 = vmul.f32 %v1544, 1.442695
    %v1567 = vpow.pop %v1566
    %v1568 = vmul.f32 %v1545, 1.442695
    %v1569 = vpow.pop %v1568
    %v1570 = vmul.f32 %v1546, 1.442695
    %v1571 = vpow.pop %v1570
    %v1572 = vmul.f32 %v1547, 1.442695
    %v1573 = vpow.pop %v1572
    %v1574 = vmul.f32 %v1548, 1.442695
    %v1575 = vpow.pop %v1574
    %v1576 = vmul.f32 %v1549, 1.442695
    %v1577 = vpow.pop %v1576
    %v1578 = vmul.f32 %v1550, 1.442695
    %v1579 = vpow.pop %v1578
    %v1580 = vmul.f32 %v1551, 1.442695
    %v1581 = vpow.pop %v1580
    %v1582 = vmul.f32 %v1552, 1.442695
    %v1583 = vpow.pop %v1582
    %v1584 = vmul.f32 %v1553, 1.442695
    %v1585 = vpow.pop %v1584
    %v1586 = vadd.f32 %v1555, 1.0
    %v1587 = vadd.f32 %v1557, 1.0
    %v1588 = vadd.f32 %v1559, 1.0
    %v1589 = vadd.f32 %v1561, 1.0
    %v1590 = vadd.f32 %v1563, 1.0
    %v1591 = vadd.f32 %v1565, 1.0
    %v1592 = vadd.f32 %v1567, 1.0
    %v1593 = vadd.f32 %v1569, 1.0
    %v1594 = vadd.f32 %v1571, 1.0
    %v1595 = vadd.f32 %v1573, 1.0
    %v1596 = vadd.f32 %v1575, 1.0
    %v1597 = vadd.f32 %v1577, 1.0
    %v1598 = vadd.f32 %v1579, 1.0
    %v1599 = vadd.f32 %v1581, 1.0
    %v1600 = vadd.f32 %v1583, 1.0
    %v1601 = vadd.f32 %v1585, 1.0
    %v1602 = vrcp.pop %v1586
    %v1603 = vmul.f32 %v1586, %v1602
    %v1604 = vsub.f32 1.0, %v1603
    %v1605 = vmul.f32 %v1602, %v1604
    %v1606 = vadd.f32 %v1602, %v1605
    %vm1607 = vweird.f32 %v1586
    %vm1608 = vweird.f32 %v1602
    %vm1609 = vmor %vm1607, %vm1608
    %v1610 = vsel %vm1609, %v1602, %v1606
    %v1611 = vand.u32 2147483647, %v1586
    %vm1612 = vcmp.eq.f32.partialorder %v1611, 8.507059e+37
    %v1613 = vand.u32 %v1586, 2147483648
    %v1614 = vor.u32 1.1754944e-38, %v1613
    %v1615 = vsel %vm1612, %v1614, %v1610
    %v1616 = vmul.f32 1.0, %v1615
    %v1617 = vrcp.pop %v1587
    %v1618 = vmul.f32 %v1587, %v1617
    %v1619 = vsub.f32 1.0, %v1618
    %v1620 = vmul.f32 %v1617, %v1619
    %v1621 = vadd.f32 %v1617, %v1620
    %vm1622 = vweird.f32 %v1587
    %vm1623 = vweird.f32 %v1617
    %vm1624 = vmor %vm1622, %vm1623
    %v1625 = vsel %vm1624, %v1617, %v1621
    %v1626 = vand.u32 2147483647, %v1587
    %vm1627 = vcmp.eq.f32.partialorder %v1626, 8.507059e+37
    %v1628 = vand.u32 %v1587, 2147483648
    %v1629 = vor.u32 1.1754944e-38, %v1628
    %v1630 = vsel %vm1627, %v1629, %v1625
    %v1631 = vmul.f32 1.0, %v1630
    %v1632 = vrcp.pop %v1588
    %v1633 = vmul.f32 %v1588, %v1632
    %v1634 = vsub.f32 1.0, %v1633
    %v1635 = vmul.f32 %v1632, %v1634
    %v1636 = vadd.f32 %v1632, %v1635
    %vm1637 = vweird.f32 %v1588
    %vm1638 = vweird.f32 %v1632
    %vm1639 = vmor %vm1637, %vm1638
    %v1640 = vsel %vm1639, %v1632, %v1636
    %v1641 = vand.u32 2147483647, %v1588
    %vm1642 = vcmp.eq.f32.partialorder %v1641, 8.507059e+37
    %v1643 = vand.u32 %v1588, 2147483648
    %v1644 = vor.u32 1.1754944e-38, %v1643
    %v1645 = vsel %vm1642, %v1644, %v1640
    %v1646 = vmul.f32 1.0, %v1645
    %v1647 = vrcp.pop %v1589
    %v1648 = vmul.f32 %v1589, %v1647
    %v1649 = vsub.f32 1.0, %v1648
    %v1650 = vmul.f32 %v1647, %v1649
    %v1651 = vadd.f32 %v1647, %v1650
    %vm1652 = vweird.f32 %v1589
    %vm1653 = vweird.f32 %v1647
    %vm1654 = vmor %vm1652, %vm1653
    %v1655 = vsel %vm1654, %v1647, %v1651
    %v1656 = vand.u32 2147483647, %v1589
    %vm1657 = vcmp.eq.f32.partialorder %v1656, 8.507059e+37
    %v1658 = vand.u32 %v1589, 2147483648
    %v1659 = vor.u32 1.1754944e-38, %v1658
    %v1660 = vsel %vm1657, %v1659, %v1655
    %v1661 = vmul.f32 1.0, %v1660
    %v1662 = vrcp.pop %v1590
    %v1663 = vmul.f32 %v1590, %v1662
    %v1664 = vsub.f32 1.0, %v1663
    %v1665 = vmul.f32 %v1662, %v1664
    %v1666 = vadd.f32 %v1662, %v1665
    %vm1667 = vweird.f32 %v1590
    %vm1668 = vweird.f32 %v1662
    %vm1669 = vmor %vm1667, %vm1668
    %v1670 = vsel %vm1669, %v1662, %v1666
    %v1671 = vand.u32 2147483647, %v1590
    %vm1672 = vcmp.eq.f32.partialorder %v1671, 8.507059e+37
    %v1673 = vand.u32 %v1590, 2147483648
    %v1674 = vor.u32 1.1754944e-38, %v1673
    %v1675 = vsel %vm1672, %v1674, %v1670
    %v1676 = vmul.f32 1.0, %v1675
    %v1677 = vrcp.pop %v1591
    %v1678 = vmul.f32 %v1591, %v1677
    %v1679 = vsub.f32 1.0, %v1678
    %v1680 = vmul.f32 %v1677, %v1679
    %v1681 = vadd.f32 %v1677, %v1680
    %vm1682 = vweird.f32 %v1591
    %vm1683 = vweird.f32 %v1677
    %vm1684 = vmor %vm1682, %vm1683
    %v1685 = vsel %vm1684, %v1677, %v1681
    %v1686 = vand.u32 2147483647, %v1591
    %vm1687 = vcmp.eq.f32.partialorder %v1686, 8.507059e+37
    %v1688 = vand.u32 %v1591, 2147483648
    %v1689 = vor.u32 1.1754944e-38, %v1688
    %v1690 = vsel %vm1687, %v1689, %v1685
    %v1691 = vmul.f32 1.0, %v1690
    %v1692 = vrcp.pop %v1592
    %v1693 = vmul.f32 %v1592, %v1692
    %v1694 = vsub.f32 1.0, %v1693
    %v1695 = vmul.f32 %v1692, %v1694
    %v1696 = vadd.f32 %v1692, %v1695
    %vm1697 = vweird.f32 %v1592
    %vm1698 = vweird.f32 %v1692
    %vm1699 = vmor %vm1697, %vm1698
    %v1700 = vsel %vm1699, %v1692, %v1696
    %v1701 = vand.u32 2147483647, %v1592
    %vm1702 = vcmp.eq.f32.partialorder %v1701, 8.507059e+37
    %v1703 = vand.u32 %v1592, 2147483648
    %v1704 = vor.u32 1.1754944e-38, %v1703
    %v1705 = vsel %vm1702, %v1704, %v1700
    %v1706 = vmul.f32 1.0, %v1705
    %v1707 = vrcp.pop %v1593
    %v1708 = vmul.f32 %v1593, %v1707
    %v1709 = vsub.f32 1.0, %v1708
    %v1710 = vmul.f32 %v1707, %v1709
    %v1711 = vadd.f32 %v1707, %v1710
    %vm1712 = vweird.f32 %v1593
    %vm1713 = vweird.f32 %v1707
    %vm1714 = vmor %vm1712, %vm1713
    %v1715 = vsel %vm1714, %v1707, %v1711
    %v1716 = vand.u32 2147483647, %v1593
    %vm1717 = vcmp.eq.f32.partialorder %v1716, 8.507059e+37
    %v1718 = vand.u32 %v1593, 2147483648
    %v1719 = vor.u32 1.1754944e-38, %v1718
    %v1720 = vsel %vm1717, %v1719, %v1715
    %v1721 = vmul.f32 1.0, %v1720
    %v1722 = vrcp.pop %v1594
    %v1723 = vmul.f32 %v1594, %v1722
    %v1724 = vsub.f32 1.0, %v1723
    %v1725 = vmul.f32 %v1722, %v1724
    %v1726 = vadd.f32 %v1722, %v1725
    %vm1727 = vweird.f32 %v1594
    %vm1728 = vweird.f32 %v1722
    %vm1729 = vmor %vm1727, %vm1728
    %v1730 = vsel %vm1729, %v1722, %v1726
    %v1731 = vand.u32 2147483647, %v1594
    %vm1732 = vcmp.eq.f32.partialorder %v1731, 8.507059e+37
    %v1733 = vand.u32 %v1594, 2147483648
    %v1734 = vor.u32 1.1754944e-38, %v1733
    %v1735 = vsel %vm1732, %v1734, %v1730
    %v1736 = vmul.f32 1.0, %v1735
    %v1737 = vrcp.pop %v1595
    %v1738 = vmul.f32 %v1595, %v1737
    %v1739 = vsub.f32 1.0, %v1738
    %v1740 = vmul.f32 %v1737, %v1739
    %v1741 = vadd.f32 %v1737, %v1740
    %vm1742 = vweird.f32 %v1595
    %vm1743 = vweird.f32 %v1737
    %vm1744 = vmor %vm1742, %vm1743
    %v1745 = vsel %vm1744, %v1737, %v1741
    %v1746 = vand.u32 2147483647, %v1595
    %vm1747 = vcmp.eq.f32.partialorder %v1746, 8.507059e+37
    %v1748 = vand.u32 %v1595, 2147483648
    %v1749 = vor.u32 1.1754944e-38, %v1748
    %v1750 = vsel %vm1747, %v1749, %v1745
    %v1751 = vmul.f32 1.0, %v1750
    %v1752 = vrcp.pop %v1596
    %v1753 = vmul.f32 %v1596, %v1752
    %v1754 = vsub.f32 1.0, %v1753
    %v1755 = vmul.f32 %v1752, %v1754
    %v1756 = vadd.f32 %v1752, %v1755
    %vm1757 = vweird.f32 %v1596
    %vm1758 = vweird.f32 %v1752
    %vm1759 = vmor %vm1757, %vm1758
    %v1760 = vsel %vm1759, %v1752, %v1756
    %v1761 = vand.u32 2147483647, %v1596
    %vm1762 = vcmp.eq.f32.partialorder %v1761, 8.507059e+37
    %v1763 = vand.u32 %v1596, 2147483648
    %v1764 = vor.u32 1.1754944e-38, %v1763
    %v1765 = vsel %vm1762, %v1764, %v1760
    %v1766 = vmul.f32 1.0, %v1765
    %v1767 = vrcp.pop %v1597
    %v1768 = vmul.f32 %v1597, %v1767
    %v1769 = vsub.f32 1.0, %v1768
    %v1770 = vmul.f32 %v1767, %v1769
    %v1771 = vadd.f32 %v1767, %v1770
    %vm1772 = vweird.f32 %v1597
    %vm1773 = vweird.f32 %v1767
    %vm1774 = vmor %vm1772, %vm1773
    %v1775 = vsel %vm1774, %v1767, %v1771
    %v1776 = vand.u32 2147483647, %v1597
    %vm1777 = vcmp.eq.f32.partialorder %v1776, 8.507059e+37
    %v1778 = vand.u32 %v1597, 2147483648
    %v1779 = vor.u32 1.1754944e-38, %v1778
    %v1780 = vsel %vm1777, %v1779, %v1775
    %v1781 = vmul.f32 1.0, %v1780
    %v1782 = vrcp.pop %v1598
    %v1783 = vmul.f32 %v1598, %v1782
    %v1784 = vsub.f32 1.0, %v1783
    %v1785 = vmul.f32 %v1782, %v1784
    %v1786 = vadd.f32 %v1782, %v1785
    %vm1787 = vweird.f32 %v1598
    %vm1788 = vweird.f32 %v1782
    %vm1789 = vmor %vm1787, %vm1788
    %v1790 = vsel %vm1789, %v1782, %v1786
    %v1791 = vand.u32 2147483647, %v1598
    %vm1792 = vcmp.eq.f32.partialorder %v1791, 8.507059e+37
    %v1793 = vand.u32 %v1598, 2147483648
    %v1794 = vor.u32 1.1754944e-38, %v1793
    %v1795 = vsel %vm1792, %v1794, %v1790
    %v1796 = vmul.f32 1.0, %v1795
    %v1797 = vrcp.pop %v1599
    %v1798 = vmul.f32 %v1599, %v1797
    %v1799 = vsub.f32 1.0, %v1798
    %v1800 = vmul.f32 %v1797, %v1799
    %v1801 = vadd.f32 %v1797, %v1800
    %vm1802 = vweird.f32 %v1599
    %vm1803 = vweird.f32 %v1797
    %vm1804 = vmor %vm1802, %vm1803
    %v1805 = vsel %vm1804, %v1797, %v1801
    %v1806 = vand.u32 2147483647, %v1599
    %vm1807 = vcmp.eq.f32.partialorder %v1806, 8.507059e+37
    %v1808 = vand.u32 %v1599, 2147483648
    %v1809 = vor.u32 1.1754944e-38, %v1808
    %v1810 = vsel %vm1807, %v1809, %v1805
    %v1811 = vmul.f32 1.0, %v1810
    %v1812 = vrcp.pop %v1600
    %v1813 = vmul.f32 %v1600, %v1812
    %v1814 = vsub.f32 1.0, %v1813
    %v1815 = vmul.f32 %v1812, %v1814
    %v1816 = vadd.f32 %v1812, %v1815
    %vm1817 = vweird.f32 %v1600
    %vm1818 = vweird.f32 %v1812
    %vm1819 = vmor %vm1817, %vm1818
    %v1820 = vsel %vm1819, %v1812, %v1816
    %v1821 = vand.u32 2147483647, %v1600
    %vm1822 = vcmp.eq.f32.partialorder %v1821, 8.507059e+37
    %v1823 = vand.u32 %v1600, 2147483648
    %v1824 = vor.u32 1.1754944e-38, %v1823
    %v1825 = vsel %vm1822, %v1824, %v1820
    %v1826 = vmul.f32 1.0, %v1825
    %v1827 = vrcp.pop %v1601
    %v1828 = vmul.f32 %v1601, %v1827
    %v1829 = vsub.f32 1.0, %v1828
    %v1830 = vmul.f32 %v1827, %v1829
    %v1831 = vadd.f32 %v1827, %v1830
    %vm1832 = vweird.f32 %v1601
    %vm1833 = vweird.f32 %v1827
    %vm1834 = vmor %vm1832, %vm1833
    %v1835 = vsel %vm1834, %v1827, %v1831
    %v1836 = vand.u32 2147483647, %v1601
    %vm1837 = vcmp.eq.f32.partialorder %v1836, 8.507059e+37
    %v1838 = vand.u32 %v1601, 2147483648
    %v1839 = vor.u32 1.1754944e-38, %v1838
    %v1840 = vsel %vm1837, %v1839, %v1835
    %v1841 = vmul.f32 1.0, %v1840
    %v1842 = vmul.f32 %v1522, %v1616
    %v1843 = vmul.f32 %v1523, %v1631
    %v1844 = vmul.f32 %v1524, %v1646
    %v1845 = vmul.f32 %v1525, %v1661
    %v1846 = vmul.f32 %v1526, %v1676
    %v1847 = vmul.f32 %v1527, %v1691
    %v1848 = vmul.f32 %v1528, %v1706
    %v1849 = vmul.f32 %v1529, %v1721
    %v1850 = vmul.f32 %v1530, %v1736
    %v1851 = vmul.f32 %v1531, %v1751
    %v1852 = vmul.f32 %v1532, %v1766
    %v1853 = vmul.f32 %v1533, %v1781
    %v1854 = vmul.f32 %v1534, %v1796
    %v1855 = vmul.f32 %v1535, %v1811
    %v1856 = vmul.f32 %v1536, %v1826
    %v1857 = vmul.f32 %v1537, %v1841
    %v1858 = vld [vmem:[%s5] sm:$0xff]
    %v1859 = vld [vmem:[%s5 + $0x8] sm:$0xff]
    %v1860 = vld [vmem:[%s5 + $0x10] sm:$0xff]
    %v1861 = vld [vmem:[%s5 + $0x18] sm:$0xff]
    %v1862 = vld [vmem:[%s5 + $0x20] sm:$0xff]
    %v1863 = vld [vmem:[%s5 + $0x28] sm:$0xff]
    %v1864 = vld [vmem:[%s5 + $0x30] sm:$0xff]
    %v1865 = vld [vmem:[%s5 + $0x38] sm:$0xff]
    %1867 = vset.pattern.permute.xlu0 0
    %1868 = vperm.xlu0 %1867, %v83
    %v1869 = vpop.permute.xlu0 %1868
    %1872 = vset.pattern.permute.xlu0 0
    %1873 = vperm.xlu0 %1872, %v84
    %v1874 = vpop.permute.xlu0 %1873
    %1877 = vset.pattern.permute.xlu0 0
    %1878 = vperm.xlu0 %1877, %v85
    %v1879 = vpop.permute.xlu0 %1878
    %1882 = vset.pattern.permute.xlu0 0
    %1883 = vperm.xlu0 %1882, %v86
    %v1884 = vpop.permute.xlu0 %1883
    %1887 = vset.pattern.permute.xlu0 0
    %1888 = vperm.xlu0 %1887, %v87
    %v1889 = vpop.permute.xlu0 %1888
    %1892 = vset.pattern.permute.xlu0 0
    %1893 = vperm.xlu0 %1892, %v88
    %v1894 = vpop.permute.xlu0 %1893
    %1897 = vset.pattern.permute.xlu0 0
    %1898 = vperm.xlu0 %1897, %v89
    %v1899 = vpop.permute.xlu0 %1898
    %1902 = vset.pattern.permute.xlu0 0
    %1903 = vperm.xlu0 %1902, %v90
    %v1904 = vpop.permute.xlu0 %1903
    %1906 = vmatpush.msra.mxu0 %v1857
    %1907 = vmatpush.msra.mxu0 %v1856
    %1908 = vmatpush.msra.mxu0 %v1855
    %1909 = vmatpush.msra.mxu0 %v1854
    %1910 = vmatpush.msra.mxu0 %v1853
    %1911 = vmatpush.msra.mxu0 %v1852
    %1912 = vmatpush.msra.mxu0 %v1851
    %1913 = vmatpush.msra.mxu0 %v1850
    %1914 = vmatpush.msra.mxu0 %v1849
    %1915 = vmatpush.msra.mxu0 %v1848
    %1916 = vmatpush.msra.mxu0 %v1847
    %1917 = vmatpush.msra.mxu0 %v1846
    %1918 = vmatpush.msra.mxu0 %v1845
    %1919 = vmatpush.msra.mxu0 %v1844
    %1920 = vmatpush.msra.mxu0 %v1843
    %1921 = vmatpush.msra.mxu0 %v1842
    %1922 = vmatmul.f32.gmra.mxu0 %v1858
    %v1923 = vpop.f32.mrf.mxu0
    %v1924 = vadd.f32 %v1869, %v1923
    %1925 = vmatmul.f32.gmra.mxu0 %v1859
    %v1926 = vpop.f32.mrf.mxu0
    %v1927 = vadd.f32 %v1874, %v1926
    %1928 = vmatmul.f32.gmra.mxu0 %v1860
    %v1929 = vpop.f32.mrf.mxu0
    %v1930 = vadd.f32 %v1879, %v1929
    %1931 = vmatmul.f32.gmra.mxu0 %v1861
    %v1932 = vpop.f32.mrf.mxu0
    %v1933 = vadd.f32 %v1884, %v1932
    %1934 = vmatmul.f32.gmra.mxu0 %v1862
    %v1935 = vpop.f32.mrf.mxu0
    %v1936 = vadd.f32 %v1889, %v1935
    %1937 = vmatmul.f32.gmra.mxu0 %v1863
    %v1938 = vpop.f32.mrf.mxu0
    %v1939 = vadd.f32 %v1894, %v1938
    %1940 = vmatmul.f32.gmra.mxu0 %v1864
    %v1941 = vpop.f32.mrf.mxu0
    %v1942 = vadd.f32 %v1899, %v1941
    %1943 = vmatmul.f32.gmra.mxu0 %v1865
    %v1944 = vpop.f32.mrf.mxu0
    %v1945 = vadd.f32 %v1904, %v1944
    %1946 = vdwg.mxu0
    %1947 = vst [vmem:[%s7] sm:$0xff] %v1924
    %1948 = vst [vmem:[%s7 + $0x8] sm:$0xff] %v1927
    %1949 = vst [vmem:[%s7 + $0x10] sm:$0xff] %v1930
    %1950 = vst [vmem:[%s7 + $0x18] sm:$0xff] %v1933
    %1951 = vst [vmem:[%s7 + $0x20] sm:$0xff] %v1936
    %1952 = vst [vmem:[%s7 + $0x28] sm:$0xff] %v1939
    %1953 = vst [vmem:[%s7 + $0x30] sm:$0xff] %v1942
    %1954 = vst [vmem:[%s7 + $0x38] sm:$0xff] %v1945
    // Predicated region
    $region34: #{forward.1} parent=1 // pred_check
      _
    $region35: #{forward.1} parent=1 // pred_check_branch
      %1956 = sbr.rel (0) target = $region37
    $region36: #{forward.1} parent=1 // pred_region
      _
    $region37: #{forward.1} parent=1 // pred_fallthru
      _
    // Predicated region
    $region38: #{forward.1} parent=1 // pred_check
      _
    $region39: #{forward.1} parent=1 // pred_check_branch
      %1958 = sbr.rel (0) target = $region41
    $region40: #{forward.1} parent=1 // pred_region
      _
    $region41: #{forward.1} parent=1 // pred_fallthru
      _
    %1959 = vsyncpa [#allocation3], 1

</llo_original>
